<compile_context>
chip_gen: v7x
topology: tpu7x:2x2x1
jax: 0.10.0
libtpu: 0.0.40
codegen_flags: <defaults>
</compile_context>

<pallas_src>
import numpy as np

import jax
import jax.numpy as jnp
from jax.experimental import pallas as pl
from jax.experimental.pallas import tpu as pltpu

# ---- hyperparameters (mirroring the PyTorch module) ----
D_MODEL = 16
NUM_HEADS = 4
HEAD_DIM = D_MODEL // NUM_HEADS
HIDDEN = 64            # dim_feedforward
NUM_LAYERS = 2
LN_EPS = 1e-5          # PyTorch LayerNorm default

# ---- packed parameter slab layout ----
SLAB_W = max(4 * D_MODEL, HIDDEN)            # 64 lanes wide
W_ROWS_PER_LAYER = 2 * D_MODEL + HIDDEN      # [Wq|Wk|Wv|Wo] + W1 + W2 rows
B_ROWS_PER_LAYER = 8                         # sublane-aligned bias blocks


def _wp_rows(input_size):
    # rows reserved for the input-projection weight (8-aligned layer blocks)
    return ((input_size + 7) // 8) * 8


def _layer_norm(x, w, b):
    mu = jnp.mean(x, axis=-1, keepdims=True)
    xc = x - mu
    var = jnp.mean(xc * xc, axis=-1, keepdims=True)
    return xc * jax.lax.rsqrt(var + LN_EPS) * w + b


def transformer_kernel(x_ref, w_ref, b_ref, scat_ref, maskv_ref, blk_ref, o_ref):
    """One batch-block (BB sequences, BB*S rows) per grid step."""
    f32 = jnp.float32
    BS, F = x_ref.shape                 # BS = BB * S
    S = scat_ref.shape[-1]
    BB = BS // S
    D = D_MODEL

    # hoisted constants (precomputed host-side, DMA'd once)
    scat = scat_ref[...]                # (H*S, S):   scat[j, s]  = 1 iff j%S == s
    maskv = maskv_ref[...]              # (H*S, D):   maskv[j, d] = 1 iff j//S == d//HEAD_DIM
    blk = blk_ref[...]                  # (H*S, H*S): blk[j, j']  = 1 iff j//S == j'//S

    def mm(a, b):                       # MXU matmul, f32 accumulation
        return jnp.dot(a, b, preferred_element_type=f32)

    x = x_ref[...]                      # (BB*S, F), f32

    # ---- input projection: Linear(input_size, d_model), whole batch block ----
    wp = w_ref[0:F, 0:D]
    bp = b_ref[0:1, 0:D]
    h = mm(x, wp) + bp                  # (BB*S, D)

    wp_rows = _wp_rows(F)
    scale = 1.0 / (HEAD_DIM ** 0.5)

    for l in range(NUM_LAYERS):         # static unroll (2 layers)
        wb = wp_rows + l * W_ROWS_PER_LAYER
        bb = (l + 1) * B_ROWS_PER_LAYER

        # static windows into the packed weight slab (no per-tensor DMAs)
        w_qkv = w_ref[wb:wb + D, 0:3 * D]                       # [Wq|Wk|Wv]
        wo = w_ref[wb:wb + D, 3 * D:4 * D]
        w1 = w_ref[wb + D:wb + 2 * D, 0:HIDDEN]
        w2 = w_ref[wb + 2 * D:wb + 2 * D + HIDDEN, 0:D]

        # one sublane-aligned (8, 64) bias load per layer, then value slices
        bias = b_ref[bb:bb + B_ROWS_PER_LAYER, :]
        b_qkv = bias[0:1, 0:3 * D]
        bo = bias[0:1, 3 * D:4 * D]
        b1 = bias[1:2, 0:HIDDEN]
        b2 = bias[2:3, 0:D]
        ln1w = bias[2:3, D:2 * D]
        ln1b = bias[2:3, 2 * D:3 * D]
        ln2w = bias[2:3, 3 * D:4 * D]
        ln2b = bias[3:4, 0:D]

        # ---- fused QKV projection over the whole batch block ----
        qkv = mm(h, w_qkv) + b_qkv                              # (BB*S, 3D)

        # ---- per-sequence multi-head attention (all heads fused) ----
        ctx_parts = []
        for s0 in range(0, BS, S):
            q = qkv[s0:s0 + S, 0:D]                             # (S, D)
            k = qkv[s0:s0 + S, D:2 * D]                         # (S, D)
            v = qkv[s0:s0 + S, 2 * D:3 * D]                     # (S, D)

            # block-diagonal K/V rows: rows[h*S+s', d] = k/v[s', d] iff d in head h
            k_rows = mm(scat, k) * maskv                        # (H*S, D)
            v_rows = mm(scat, v) * maskv                        # (H*S, D)

            # scores = q @ k_rows.T on the MXU (no explicit transpose)
            scores = jax.lax.dot_general(
                q, k_rows, (((1,), (1,)), ((), ())),
                preferred_element_type=f32) * scale             # (S, H*S)
            scores = scores - jnp.max(scores, axis=-1, keepdims=True)
            p = jnp.exp(scores)
            denom = mm(p, blk)                                  # per-head denominators
            p = p * pl.reciprocal(denom, approx=True)
            ctx_parts.append(mm(p, v_rows))                     # (S, D), heads concat'd

        ctx = ctx_parts[0] if BB == 1 else jnp.concatenate(ctx_parts, axis=0)
        attn = mm(ctx, wo) + bo                                 # batched out-proj

        h = _layer_norm(h + attn, ln1w, ln1b)                   # post-LN

        # ---- feed-forward (ReLU), whole batch block ----
        ff = jnp.maximum(mm(h, w1) + b1, 0.0)
        ff = mm(ff, w2) + b2
        h = _layer_norm(h + ff, ln2w, ln2b)

    # last sequence position of each sequence (PyTorch `output[-1, :, :]`)
    for b in range(BB):
        o_ref[b] = h[(b + 1) * S - 1:(b + 1) * S, :]


def make_consts(seq_len):
    """Constant selector / head-mask / block matrices (hoisted out of kernel)."""
    S, D, HD = seq_len, D_MODEL, HEAD_DIM
    HS = NUM_HEADS * S
    j = np.arange(HS)[:, None]
    scat = (j % S == np.arange(S)[None, :]).astype(np.float32)            # (HS, S)
    maskv = (j // S == (np.arange(D)[None, :] // HD)).astype(np.float32)  # (HS, D)
    blk = (j // S == (np.arange(HS)[None, :] // S)).astype(np.float32)    # (HS, HS)
    return jnp.asarray(scat), jnp.asarray(maskv), jnp.asarray(blk)


def pack_params(p, input_size):
    """Pack all encoder parameters into a weight slab and a bias/LN slab."""
    F, D, H = input_size, D_MODEL, HIDDEN
    wp_rows = _wp_rows(F)
    wbuf = np.zeros((wp_rows + NUM_LAYERS * W_ROWS_PER_LAYER, SLAB_W), np.float32)
    bbuf = np.zeros(((NUM_LAYERS + 1) * B_ROWS_PER_LAYER, SLAB_W), np.float32)

    wbuf[0:F, 0:D] = np.asarray(p['wp']).T          # (F, D)
    bbuf[0, 0:D] = np.asarray(p['bp']).reshape(-1)
    for l in range(NUM_LAYERS):
        wb = wp_rows + l * W_ROWS_PER_LAYER
        bb = (l + 1) * B_ROWS_PER_LAYER
        in_w = np.asarray(p['in_w'][l])             # (3D, D), torch (out, in)
        wbuf[wb:wb + D, 0 * D:1 * D] = in_w[0:D].T
        wbuf[wb:wb + D, 1 * D:2 * D] = in_w[D:2 * D].T
        wbuf[wb:wb + D, 2 * D:3 * D] = in_w[2 * D:3 * D].T
        wbuf[wb:wb + D, 3 * D:4 * D] = np.asarray(p['out_w'][l]).T
        wbuf[wb + D:wb + 2 * D, 0:H] = np.asarray(p['lin1_w'][l]).T
        wbuf[wb + 2 * D:wb + 2 * D + H, 0:D] = np.asarray(p['lin2_w'][l]).T

        bbuf[bb, 0:3 * D] = np.asarray(p['in_b'][l]).reshape(-1)
        bbuf[bb, 3 * D:4 * D] = np.asarray(p['out_b'][l]).reshape(-1)
        bbuf[bb + 1, 0:H] = np.asarray(p['lin1_b'][l]).reshape(-1)
        bbuf[bb + 2, 0 * D:1 * D] = np.asarray(p['lin2_b'][l]).reshape(-1)
        bbuf[bb + 2, 1 * D:2 * D] = np.asarray(p['ln1_w'][l]).reshape(-1)
        bbuf[bb + 2, 2 * D:3 * D] = np.asarray(p['ln1_b'][l]).reshape(-1)
        bbuf[bb + 2, 3 * D:4 * D] = np.asarray(p['ln2_w'][l]).reshape(-1)
        bbuf[bb + 3, 0:D] = np.asarray(p['ln2_b'][l]).reshape(-1)
    return jnp.asarray(wbuf), jnp.asarray(bbuf)


def _choose_block_batch(B, max_bb=16):
    """Largest BB dividing B with at least 2 grid steps (v7x dual-TC); cap 16."""
    best = None
    for cand in range(1, min(B, max_bb) + 1):
        if B % cand == 0 and B // cand >= 2:
            best = cand
    return best if best is not None else B


def transformer_forward(x, wbuf, bbuf, consts, wd, bd, *, block_batch=None):
    B, S, F = x.shape
    BB = block_batch if block_batch is not None else _choose_block_batch(B)
    assert B % BB == 0 and (BB * S) % 8 == 0
    scat, maskv, blk = consts
    x2 = x.reshape(B * S, F)            # host-side reshape: kernel sees 2-D rows

    last_h = pl.pallas_call(
        transformer_kernel,
        out_shape=jax.ShapeDtypeStruct((B, 1, D_MODEL), jnp.float32),
        grid=(B // BB,),
        in_specs=[
            pl.BlockSpec((BB * S, F), lambda i: (i, 0)),
            pl.BlockSpec(wbuf.shape, lambda i: (0, 0)),    # VMEM-resident slab
            pl.BlockSpec(bbuf.shape, lambda i: (0, 0)),    # VMEM-resident slab
            pl.BlockSpec(scat.shape, lambda i: (0, 0)),    # hoisted constants
            pl.BlockSpec(maskv.shape, lambda i: (0, 0)),
            pl.BlockSpec(blk.shape, lambda i: (0, 0)),
        ],
        out_specs=pl.BlockSpec((BB, 1, D_MODEL), lambda i: (i, 0, 0)),
        compiler_params=pltpu.CompilerParams(
            dimension_semantics=("parallel",)),
    )(x2, wbuf, bbuf, scat, maskv, blk)
    # decoder Linear(d_model, 1) in the wrapper keeps the kernel store
    # lane-dense (avoids a lane-width-1 masked vst).
    return last_h.reshape(B, D_MODEL) @ wd.T + bd


def init_params(key, input_size):
    ks = iter(jax.random.split(key, 32))

    def linear(out_dim, in_dim):
        bound = 1.0 / (in_dim ** 0.5)
        w = jax.random.uniform(next(ks), (out_dim, in_dim), jnp.float32,
                               -bound, bound)
        b = jax.random.uniform(next(ks), (1, out_dim), jnp.float32,
                               -bound, bound)
        return w, b

    wp, bp = linear(D_MODEL, input_size)

    in_w, in_b, out_w, out_b = [], [], [], []
    lin1_w, lin1_b, lin2_w, lin2_b = [], [], [], []
    ln1_w, ln1_b, ln2_w, ln2_b = [], [], [], []
    for _ in range(NUM_LAYERS):
        w, b = linear(3 * D_MODEL, D_MODEL); in_w.append(w); in_b.append(b)
        w, b = linear(D_MODEL, D_MODEL);     out_w.append(w); out_b.append(b)
        w, b = linear(HIDDEN, D_MODEL);      lin1_w.append(w); lin1_b.append(b)
        w, b = linear(D_MODEL, HIDDEN);      lin2_w.append(w); lin2_b.append(b)
        ln1_w.append(jnp.ones((1, D_MODEL), jnp.float32))
        ln1_b.append(jnp.zeros((1, D_MODEL), jnp.float32))
        ln2_w.append(jnp.ones((1, D_MODEL), jnp.float32))
        ln2_b.append(jnp.zeros((1, D_MODEL), jnp.float32))
    wd, bd = linear(1, D_MODEL)

    stack = lambda xs: jnp.stack(xs, axis=0)
    return dict(wp=wp, bp=bp,
                in_w=stack(in_w), in_b=stack(in_b),
                out_w=stack(out_w), out_b=stack(out_b),
                lin1_w=stack(lin1_w), lin1_b=stack(lin1_b),
                lin2_w=stack(lin2_w), lin2_b=stack(lin2_b),
                ln1_w=stack(ln1_w), ln1_b=stack(ln1_b),
                ln2_w=stack(ln2_w), ln2_b=stack(ln2_b),
                wd=wd, bd=bd)


def reference_forward(x, p):
    """Pure-JAX reference (independent formulation, reshape-based heads)."""
    def ln(t, w, b):
        mu = jnp.mean(t, axis=-1, keepdims=True)
        var = jnp.mean((t - mu) ** 2, axis=-1, keepdims=True)
        return (t - mu) / jnp.sqrt(var + LN_EPS) * w + b

    B, S, _ = x.shape
    h = jnp.einsum('bsf,df->bsd', x, p['wp']) + p['bp']
    for l in range(NUM_LAYERS):
        qkv = jnp.einsum('bsd,gd->bsg', h, p['in_w'][l]) + p['in_b'][l]
        q, k, v = jnp.split(qkv, 3, axis=-1)
        sh = lambda t: t.reshape(B, S, NUM_HEADS, HEAD_DIM).transpose(0, 2, 1, 3)
        qh, kh, vh = sh(q), sh(k), sh(v)
        scores = jnp.einsum('bhqd,bhkd->bhqk', qh, kh) / (HEAD_DIM ** 0.5)
        pa = jax.nn.softmax(scores, axis=-1)
        oh = jnp.einsum('bhqk,bhkd->bhqd', pa, vh)
        o = oh.transpose(0, 2, 1, 3).reshape(B, S, D_MODEL)
        attn = jnp.einsum('bsd,od->bso', o, p['out_w'][l]) + p['out_b'][l]
        h = ln(h + attn, p['ln1_w'][l], p['ln1_b'][l])
        ff = jax.nn.relu(jnp.einsum('bsd,hd->bsh', h, p['lin1_w'][l]) + p['lin1_b'][l])
        ff = jnp.einsum('bsh,dh->bsd', ff, p['lin2_w'][l]) + p['lin2_b'][l]
        h = ln(h + ff, p['ln2_w'][l], p['ln2_b'][l])
    return jnp.einsum('bd,od->bo', h[:, -1, :], p['wd']) + p['bd']


if __name__ == "__main__":
    key = jax.random.PRNGKey(0)
    kx, kp, kx2 = jax.random.split(key, 3)

    # primary config (matches the PyTorch spec at small scale)
    B, S, F = 2, 8, 4                     # batch, seq_len, input_size
    x = jax.random.normal(kx, (B, S, F), jnp.float32)
    params = init_params(kp, F)
    wbuf, bbuf = pack_params(params, F)
    consts = make_consts(S)

    ref = reference_forward(x, params)
    out = transformer_forward(x, wbuf, bbuf, consts, params['wd'], params['bd'])
    out = jax.block_until_ready(out)
    assert out.shape == (B, 1)
    assert jnp.allclose(out, ref, rtol=5e-3, atol=5e-3), (out, ref)

    # batch-blocked path: 8 sequences -> 2 grid steps of BB=4 sequences each
    B2 = 8
    x_big = jax.random.normal(kx2, (B2, S, F), jnp.float32)
    ref2 = reference_forward(x_big, params)
    out2 = transformer_forward(x_big, wbuf, bbuf, consts,
                               params['wd'], params['bd'])
    out2 = jax.block_until_ready(out2)
    assert out2.shape == (B2, 1)
    assert jnp.allclose(out2, ref2, rtol=5e-3, atol=5e-3), (out2, ref2)

    print("KERNEL_OK")
</pallas_src>

<mosaic_0001>
module attributes {stable_mosaic.version = 11 : i64} {
  func.func @transformer_kernel(%arg0: i32, %arg1: memref<8x4xf32, #tpu.memory_space<vmem>>, %arg2: memref<200x64xf32, #tpu.memory_space<vmem>>, %arg3: memref<24x64xf32, #tpu.memory_space<vmem>>, %arg4: memref<32x8xf32, #tpu.memory_space<vmem>>, %arg5: memref<32x16xf32, #tpu.memory_space<vmem>>, %arg6: memref<32x32xf32, #tpu.memory_space<vmem>>, %arg7: memref<1x1x16xf32, #tpu.memory_space<vmem>>) attributes {dimension_semantics = [#tpu.dimension_semantics<parallel>], iteration_bounds = array<i64: 2>, scalar_prefetch = 0 : i64, scratch_operands = 0 : i64, tpu.core_type = #tpu.core_type<tc>, window_params = [{transform_indices = @transform_0, window_bounds = array<i64: 8, 4>}, {pipeline_mode = #tpu.pipeline_mode<synchronous>, transform_indices = @transform_1, window_bounds = array<i64: 200, 64>}, {pipeline_mode = #tpu.pipeline_mode<synchronous>, transform_indices = @transform_2, window_bounds = array<i64: 24, 64>}, {pipeline_mode = #tpu.pipeline_mode<synchronous>, transform_indices = @transform_3, window_bounds = array<i64: 32, 8>}, {pipeline_mode = #tpu.pipeline_mode<synchronous>, transform_indices = @transform_4, window_bounds = array<i64: 32, 16>}, {pipeline_mode = #tpu.pipeline_mode<synchronous>, transform_indices = @transform_5, window_bounds = array<i64: 32, 32>}, {transform_indices = @transform_6, window_bounds = array<i64: 1, 1, 16>}]} {
    %c0 = arith.constant 0 : index
    %c0_0 = arith.constant 0 : index
    %0 = vector.load %arg4[%c0, %c0_0] : memref<32x8xf32, #tpu.memory_space<vmem>>, vector<32x8xf32>
    %c0_1 = arith.constant 0 : index
    %c0_2 = arith.constant 0 : index
    %1 = vector.load %arg5[%c0_1, %c0_2] : memref<32x16xf32, #tpu.memory_space<vmem>>, vector<32x16xf32>
    %c0_3 = arith.constant 0 : index
    %c0_4 = arith.constant 0 : index
    %2 = vector.load %arg6[%c0_3, %c0_4] : memref<32x32xf32, #tpu.memory_space<vmem>>, vector<32x32xf32>
    %c0_5 = arith.constant 0 : index
    %c0_6 = arith.constant 0 : index
    %3 = vector.load %arg1[%c0_5, %c0_6] : memref<8x4xf32, #tpu.memory_space<vmem>>, vector<8x4xf32>
    %c0_7 = arith.constant 0 : index
    %c0_8 = arith.constant 0 : index
    %4 = vector.load %arg2[%c0_7, %c0_8] : memref<200x64xf32, #tpu.memory_space<vmem>>, vector<4x16xf32>
    %c0_9 = arith.constant 0 : index
    %c0_10 = arith.constant 0 : index
    %5 = vector.load %arg3[%c0_9, %c0_10] : memref<24x64xf32, #tpu.memory_space<vmem>>, vector<1x16xf32>
    %cst = arith.constant dense<0.000000e+00> : vector<8x16xf32>
    %6 = tpu.matmul %3, %4, %cst {dimension_numbers = #tpu.dot_dimension_numbers<[1], [0], [0], [1], [0, 0, 1, 1], [], []>} : vector<8x4xf32>, vector<4x16xf32>, vector<8x16xf32> -> vector<8x16xf32>
    %7 = vector.broadcast %5 : vector<1x16xf32> to vector<8x16xf32>
    %8 = arith.addf %6, %7 : vector<8x16xf32>
    %c8 = arith.constant 8 : index
    %c0_11 = arith.constant 0 : index
    %9 = vector.load %arg2[%c8, %c0_11] : memref<200x64xf32, #tpu.memory_space<vmem>>, vector<16x48xf32>
    %c8_12 = arith.constant 8 : index
    %c48 = arith.constant 48 : index
    %10 = vector.load %arg2[%c8_12, %c48] : memref<200x64xf32, #tpu.memory_space<vmem>>, vector<16x16xf32>
    %c24 = arith.constant 24 : index
    %c0_13 = arith.constant 0 : index
    %11 = vector.load %arg2[%c24, %c0_13] : memref<200x64xf32, #tpu.memory_space<vmem>>, vector<16x64xf32>
    %c40 = arith.constant 40 : index
    %c0_14 = arith.constant 0 : index
    %12 = vector.load %arg2[%c40, %c0_14] : memref<200x64xf32, #tpu.memory_space<vmem>>, vector<64x16xf32>
    %c8_15 = arith.constant 8 : index
    %c0_16 = arith.constant 0 : index
    %13 = vector.load %arg3[%c8_15, %c0_16] : memref<24x64xf32, #tpu.memory_space<vmem>>, vector<8x64xf32>
    %14 = vector.extract_strided_slice %13 {offsets = [0, 0], sizes = [1, 48], strides = [1, 1]} : vector<8x64xf32> to vector<1x48xf32>
    %15 = vector.extract_strided_slice %13 {offsets = [0, 48], sizes = [1, 16], strides = [1, 1]} : vector<8x64xf32> to vector<1x16xf32>
    %16 = vector.extract_strided_slice %13 {offsets = [1, 0], sizes = [1, 64], strides = [1, 1]} : vector<8x64xf32> to vector<1x64xf32>
    %17 = vector.extract_strided_slice %13 {offsets = [2, 0], sizes = [1, 16], strides = [1, 1]} : vector<8x64xf32> to vector<1x16xf32>
    %18 = vector.extract_strided_slice %13 {offsets = [2, 16], sizes = [1, 16], strides = [1, 1]} : vector<8x64xf32> to vector<1x16xf32>
    %19 = vector.extract_strided_slice %13 {offsets = [2, 32], sizes = [1, 16], strides = [1, 1]} : vector<8x64xf32> to vector<1x16xf32>
    %20 = vector.extract_strided_slice %13 {offsets = [2, 48], sizes = [1, 16], strides = [1, 1]} : vector<8x64xf32> to vector<1x16xf32>
    %21 = vector.extract_strided_slice %13 {offsets = [3, 0], sizes = [1, 16], strides = [1, 1]} : vector<8x64xf32> to vector<1x16xf32>
    %cst_17 = arith.constant dense<0.000000e+00> : vector<8x48xf32>
    %22 = tpu.matmul %8, %9, %cst_17 {dimension_numbers = #tpu.dot_dimension_numbers<[1], [0], [0], [1], [0, 0, 1, 1], [], []>} : vector<8x16xf32>, vector<16x48xf32>, vector<8x48xf32> -> vector<8x48xf32>
    %23 = vector.broadcast %14 : vector<1x48xf32> to vector<8x48xf32>
    %24 = arith.addf %22, %23 : vector<8x48xf32>
    %25 = vector.extract_strided_slice %24 {offsets = [0, 0], sizes = [8, 16], strides = [1, 1]} : vector<8x48xf32> to vector<8x16xf32>
    %26 = vector.extract_strided_slice %24 {offsets = [0, 16], sizes = [8, 16], strides = [1, 1]} : vector<8x48xf32> to vector<8x16xf32>
    %27 = vector.extract_strided_slice %24 {offsets = [0, 32], sizes = [8, 16], strides = [1, 1]} : vector<8x48xf32> to vector<8x16xf32>
    %cst_18 = arith.constant dense<0.000000e+00> : vector<32x16xf32>
    %28 = tpu.matmul %0, %26, %cst_18 {dimension_numbers = #tpu.dot_dimension_numbers<[1], [0], [0], [1], [0, 0, 1, 1], [], []>} : vector<32x8xf32>, vector<8x16xf32>, vector<32x16xf32> -> vector<32x16xf32>
    %29 = arith.mulf %28, %1 : vector<32x16xf32>
    %cst_19 = arith.constant dense<0.000000e+00> : vector<32x16xf32>
    %30 = tpu.matmul %0, %27, %cst_19 {dimension_numbers = #tpu.dot_dimension_numbers<[1], [0], [0], [1], [0, 0, 1, 1], [], []>} : vector<32x8xf32>, vector<8x16xf32>, vector<32x16xf32> -> vector<32x16xf32>
    %31 = arith.mulf %30, %1 : vector<32x16xf32>
    %cst_20 = arith.constant dense<0.000000e+00> : vector<8x32xf32>
    %32 = tpu.matmul %25, %29, %cst_20 {dimension_numbers = #tpu.dot_dimension_numbers<[1], [1], [0], [0], [0, 0, 1, 0], [], []>} : vector<8x16xf32>, vector<32x16xf32>, vector<8x32xf32> -> vector<8x32xf32>
    %cst_21 = arith.constant 5.000000e-01 : f32
    %33 = vector.broadcast %cst_21 : f32 to vector<8x32xf32>
    %34 = arith.mulf %32, %33 : vector<8x32xf32>
    %cst_22 = arith.constant dense<0xFF800000> : vector<8xf32>
    %35 = vector.multi_reduction <maximumf>, %34, %cst_22 [1] : vector<8x32xf32> to vector<8xf32>
    %36 = vector.shape_cast %35 : vector<8xf32> to vector<8x1xf32>
    %37 = vector.broadcast %36 : vector<8x1xf32> to vector<8x32xf32>
    %38 = arith.subf %34, %37 : vector<8x32xf32>
    %39 = math.exp %38 : vector<8x32xf32>
    %cst_23 = arith.constant dense<0.000000e+00> : vector<8x32xf32>
    %40 = tpu.matmul %39, %2, %cst_23 {dimension_numbers = #tpu.dot_dimension_numbers<[1], [0], [0], [1], [0, 0, 1, 1], [], []>} : vector<8x32xf32>, vector<32x32xf32>, vector<8x32xf32> -> vector<8x32xf32>
    %41 = tpu.reciprocal %40 {approx = true} : vector<8x32xf32> -> vector<8x32xf32>
    %42 = arith.mulf %39, %41 : vector<8x32xf32>
    %cst_24 = arith.constant dense<0.000000e+00> : vector<8x16xf32>
    %43 = tpu.matmul %42, %31, %cst_24 {dimension_numbers = #tpu.dot_dimension_numbers<[1], [0], [0], [1], [0, 0, 1, 1], [], []>} : vector<8x32xf32>, vector<32x16xf32>, vector<8x16xf32> -> vector<8x16xf32>
    %cst_25 = arith.constant dense<0.000000e+00> : vector<8x16xf32>
    %44 = tpu.matmul %43, %10, %cst_25 {dimension_numbers = #tpu.dot_dimension_numbers<[1], [0], [0], [1], [0, 0, 1, 1], [], []>} : vector<8x16xf32>, vector<16x16xf32>, vector<8x16xf32> -> vector<8x16xf32>
    %45 = vector.broadcast %15 : vector<1x16xf32> to vector<8x16xf32>
    %46 = arith.addf %44, %45 : vector<8x16xf32>
    %47 = arith.addf %8, %46 : vector<8x16xf32>
    %cst_26 = arith.constant dense<0.000000e+00> : vector<8xf32>
    %48 = vector.multi_reduction <add>, %47, %cst_26 [1] : vector<8x16xf32> to vector<8xf32>
    %49 = vector.shape_cast %48 : vector<8xf32> to vector<8x1xf32>
    %cst_27 = arith.constant 1.600000e+01 : f32
    %50 = vector.broadcast %cst_27 : f32 to vector<8x1xf32>
    %51 = arith.divf %49, %50 : vector<8x1xf32>
    %52 = vector.broadcast %51 : vector<8x1xf32> to vector<8x16xf32>
    %53 = arith.subf %47, %52 : vector<8x16xf32>
    %54 = arith.mulf %53, %53 : vector<8x16xf32>
    %cst_28 = arith.constant dense<0.000000e+00> : vector<8xf32>
    %55 = vector.multi_reduction <add>, %54, %cst_28 [1] : vector<8x16xf32> to vector<8xf32>
    %56 = vector.shape_cast %55 : vector<8xf32> to vector<8x1xf32>
    %cst_29 = arith.constant 1.600000e+01 : f32
    %57 = vector.broadcast %cst_29 : f32 to vector<8x1xf32>
    %58 = arith.divf %56, %57 : vector<8x1xf32>
    %cst_30 = arith.constant 9.99999974E-6 : f32
    %59 = vector.broadcast %cst_30 : f32 to vector<8x1xf32>
    %60 = arith.addf %58, %59 : vector<8x1xf32>
    %61 = math.rsqrt %60 : vector<8x1xf32>
    %62 = vector.broadcast %61 : vector<8x1xf32> to vector<8x16xf32>
    %63 = arith.mulf %53, %62 : vector<8x16xf32>
    %64 = vector.broadcast %18 : vector<1x16xf32> to vector<8x16xf32>
    %65 = arith.mulf %63, %64 : vector<8x16xf32>
    %66 = vector.broadcast %19 : vector<1x16xf32> to vector<8x16xf32>
    %67 = arith.addf %65, %66 : vector<8x16xf32>
    %cst_31 = arith.constant dense<0.000000e+00> : vector<8x64xf32>
    %68 = tpu.matmul %67, %11, %cst_31 {dimension_numbers = #tpu.dot_dimension_numbers<[1], [0], [0], [1], [0, 0, 1, 1], [], []>} : vector<8x16xf32>, vector<16x64xf32>, vector<8x64xf32> -> vector<8x64xf32>
    %69 = vector.broadcast %16 : vector<1x64xf32> to vector<8x64xf32>
    %70 = arith.addf %68, %69 : vector<8x64xf32>
    %cst_32 = arith.constant 0.000000e+00 : f32
    %71 = vector.broadcast %cst_32 : f32 to vector<8x64xf32>
    %72 = arith.maximumf %70, %71 : vector<8x64xf32>
    %cst_33 = arith.constant dense<0.000000e+00> : vector<8x16xf32>
    %73 = tpu.matmul %72, %12, %cst_33 {dimension_numbers = #tpu.dot_dimension_numbers<[1], [0], [0], [1], [0, 0, 1, 1], [], []>} : vector<8x64xf32>, vector<64x16xf32>, vector<8x16xf32> -> vector<8x16xf32>
    %74 = vector.broadcast %17 : vector<1x16xf32> to vector<8x16xf32>
    %75 = arith.addf %73, %74 : vector<8x16xf32>
    %76 = arith.addf %67, %75 : vector<8x16xf32>
    %cst_34 = arith.constant dense<0.000000e+00> : vector<8xf32>
    %77 = vector.multi_reduction <add>, %76, %cst_34 [1] : vector<8x16xf32> to vector<8xf32>
    %78 = vector.shape_cast %77 : vector<8xf32> to vector<8x1xf32>
    %cst_35 = arith.constant 1.600000e+01 : f32
    %79 = vector.broadcast %cst_35 : f32 to vector<8x1xf32>
    %80 = arith.divf %78, %79 : vector<8x1xf32>
    %81 = vector.broadcast %80 : vector<8x1xf32> to vector<8x16xf32>
    %82 = arith.subf %76, %81 : vector<8x16xf32>
    %83 = arith.mulf %82, %82 : vector<8x16xf32>
    %cst_36 = arith.constant dense<0.000000e+00> : vector<8xf32>
    %84 = vector.multi_reduction <add>, %83, %cst_36 [1] : vector<8x16xf32> to vector<8xf32>
    %85 = vector.shape_cast %84 : vector<8xf32> to vector<8x1xf32>
    %cst_37 = arith.constant 1.600000e+01 : f32
    %86 = vector.broadcast %cst_37 : f32 to vector<8x1xf32>
    %87 = arith.divf %85, %86 : vector<8x1xf32>
    %cst_38 = arith.constant 9.99999974E-6 : f32
    %88 = vector.broadcast %cst_38 : f32 to vector<8x1xf32>
    %89 = arith.addf %87, %88 : vector<8x1xf32>
    %90 = math.rsqrt %89 : vector<8x1xf32>
    %91 = vector.broadcast %90 : vector<8x1xf32> to vector<8x16xf32>
    %92 = arith.mulf %82, %91 : vector<8x16xf32>
    %93 = vector.broadcast %20 : vector<1x16xf32> to vector<8x16xf32>
    %94 = arith.mulf %92, %93 : vector<8x16xf32>
    %95 = vector.broadcast %21 : vector<1x16xf32> to vector<8x16xf32>
    %96 = arith.addf %94, %95 : vector<8x16xf32>
    %c104 = arith.constant 104 : index
    %c0_39 = arith.constant 0 : index
    %97 = vector.load %arg2[%c104, %c0_39] : memref<200x64xf32, #tpu.memory_space<vmem>>, vector<16x48xf32>
    %c104_40 = arith.constant 104 : index
    %c48_41 = arith.constant 48 : index
    %98 = vector.load %arg2[%c104_40, %c48_41] : memref<200x64xf32, #tpu.memory_space<vmem>>, vector<16x16xf32>
    %c120 = arith.constant 120 : index
    %c0_42 = arith.constant 0 : index
    %99 = vector.load %arg2[%c120, %c0_42] : memref<200x64xf32, #tpu.memory_space<vmem>>, vector<16x64xf32>
    %c136 = arith.constant 136 : index
    %c0_43 = arith.constant 0 : index
    %100 = vector.load %arg2[%c136, %c0_43] : memref<200x64xf32, #tpu.memory_space<vmem>>, vector<64x16xf32>
    %c16 = arith.constant 16 : index
    %c0_44 = arith.constant 0 : index
    %101 = vector.load %arg3[%c16, %c0_44] : memref<24x64xf32, #tpu.memory_space<vmem>>, vector<8x64xf32>
    %102 = vector.extract_strided_slice %101 {offsets = [0, 0], sizes = [1, 48], strides = [1, 1]} : vector<8x64xf32> to vector<1x48xf32>
    %103 = vector.extract_strided_slice %101 {offsets = [0, 48], sizes = [1, 16], strides = [1, 1]} : vector<8x64xf32> to vector<1x16xf32>
    %104 = vector.extract_strided_slice %101 {offsets = [1, 0], sizes = [1, 64], strides = [1, 1]} : vector<8x64xf32> to vector<1x64xf32>
    %105 = vector.extract_strided_slice %101 {offsets = [2, 0], sizes = [1, 16], strides = [1, 1]} : vector<8x64xf32> to vector<1x16xf32>
    %106 = vector.extract_strided_slice %101 {offsets = [2, 16], sizes = [1, 16], strides = [1, 1]} : vector<8x64xf32> to vector<1x16xf32>
    %107 = vector.extract_strided_slice %101 {offsets = [2, 32], sizes = [1, 16], strides = [1, 1]} : vector<8x64xf32> to vector<1x16xf32>
    %108 = vector.extract_strided_slice %101 {offsets = [2, 48], sizes = [1, 16], strides = [1, 1]} : vector<8x64xf32> to vector<1x16xf32>
    %109 = vector.extract_strided_slice %101 {offsets = [3, 0], sizes = [1, 16], strides = [1, 1]} : vector<8x64xf32> to vector<1x16xf32>
    %cst_45 = arith.constant dense<0.000000e+00> : vector<8x48xf32>
    %110 = tpu.matmul %96, %97, %cst_45 {dimension_numbers = #tpu.dot_dimension_numbers<[1], [0], [0], [1], [0, 0, 1, 1], [], []>} : vector<8x16xf32>, vector<16x48xf32>, vector<8x48xf32> -> vector<8x48xf32>
    %111 = vector.broadcast %102 : vector<1x48xf32> to vector<8x48xf32>
    %112 = arith.addf %110, %111 : vector<8x48xf32>
    %113 = vector.extract_strided_slice %112 {offsets = [0, 0], sizes = [8, 16], strides = [1, 1]} : vector<8x48xf32> to vector<8x16xf32>
    %114 = vector.extract_strided_slice %112 {offsets = [0, 16], sizes = [8, 16], strides = [1, 1]} : vector<8x48xf32> to vector<8x16xf32>
    %115 = vector.extract_strided_slice %112 {offsets = [0, 32], sizes = [8, 16], strides = [1, 1]} : vector<8x48xf32> to vector<8x16xf32>
    %cst_46 = arith.constant dense<0.000000e+00> : vector<32x16xf32>
    %116 = tpu.matmul %0, %114, %cst_46 {dimension_numbers = #tpu.dot_dimension_numbers<[1], [0], [0], [1], [0, 0, 1, 1], [], []>} : vector<32x8xf32>, vector<8x16xf32>, vector<32x16xf32> -> vector<32x16xf32>
    %117 = arith.mulf %116, %1 : vector<32x16xf32>
    %cst_47 = arith.constant dense<0.000000e+00> : vector<32x16xf32>
    %118 = tpu.matmul %0, %115, %cst_47 {dimension_numbers = #tpu.dot_dimension_numbers<[1], [0], [0], [1], [0, 0, 1, 1], [], []>} : vector<32x8xf32>, vector<8x16xf32>, vector<32x16xf32> -> vector<32x16xf32>
    %119 = arith.mulf %118, %1 : vector<32x16xf32>
    %cst_48 = arith.constant dense<0.000000e+00> : vector<8x32xf32>
    %120 = tpu.matmul %113, %117, %cst_48 {dimension_numbers = #tpu.dot_dimension_numbers<[1], [1], [0], [0], [0, 0, 1, 0], [], []>} : vector<8x16xf32>, vector<32x16xf32>, vector<8x32xf32> -> vector<8x32xf32>
    %cst_49 = arith.constant 5.000000e-01 : f32
    %121 = vector.broadcast %cst_49 : f32 to vector<8x32xf32>
    %122 = arith.mulf %120, %121 : vector<8x32xf32>
    %cst_50 = arith.constant dense<0xFF800000> : vector<8xf32>
    %123 = vector.multi_reduction <maximumf>, %122, %cst_50 [1] : vector<8x32xf32> to vector<8xf32>
    %124 = vector.shape_cast %123 : vector<8xf32> to vector<8x1xf32>
    %125 = vector.broadcast %124 : vector<8x1xf32> to vector<8x32xf32>
    %126 = arith.subf %122, %125 : vector<8x32xf32>
    %127 = math.exp %126 : vector<8x32xf32>
    %cst_51 = arith.constant dense<0.000000e+00> : vector<8x32xf32>
    %128 = tpu.matmul %127, %2, %cst_51 {dimension_numbers = #tpu.dot_dimension_numbers<[1], [0], [0], [1], [0, 0, 1, 1], [], []>} : vector<8x32xf32>, vector<32x32xf32>, vector<8x32xf32> -> vector<8x32xf32>
    %129 = tpu.reciprocal %128 {approx = true} : vector<8x32xf32> -> vector<8x32xf32>
    %130 = arith.mulf %127, %129 : vector<8x32xf32>
    %cst_52 = arith.constant dense<0.000000e+00> : vector<8x16xf32>
    %131 = tpu.matmul %130, %119, %cst_52 {dimension_numbers = #tpu.dot_dimension_numbers<[1], [0], [0], [1], [0, 0, 1, 1], [], []>} : vector<8x32xf32>, vector<32x16xf32>, vector<8x16xf32> -> vector<8x16xf32>
    %cst_53 = arith.constant dense<0.000000e+00> : vector<8x16xf32>
    %132 = tpu.matmul %131, %98, %cst_53 {dimension_numbers = #tpu.dot_dimension_numbers<[1], [0], [0], [1], [0, 0, 1, 1], [], []>} : vector<8x16xf32>, vector<16x16xf32>, vector<8x16xf32> -> vector<8x16xf32>
    %133 = vector.broadcast %103 : vector<1x16xf32> to vector<8x16xf32>
    %134 = arith.addf %132, %133 : vector<8x16xf32>
    %135 = arith.addf %96, %134 : vector<8x16xf32>
    %cst_54 = arith.constant dense<0.000000e+00> : vector<8xf32>
    %136 = vector.multi_reduction <add>, %135, %cst_54 [1] : vector<8x16xf32> to vector<8xf32>
    %137 = vector.shape_cast %136 : vector<8xf32> to vector<8x1xf32>
    %cst_55 = arith.constant 1.600000e+01 : f32
    %138 = vector.broadcast %cst_55 : f32 to vector<8x1xf32>
    %139 = arith.divf %137, %138 : vector<8x1xf32>
    %140 = vector.broadcast %139 : vector<8x1xf32> to vector<8x16xf32>
    %141 = arith.subf %135, %140 : vector<8x16xf32>
    %142 = arith.mulf %141, %141 : vector<8x16xf32>
    %cst_56 = arith.constant dense<0.000000e+00> : vector<8xf32>
    %143 = vector.multi_reduction <add>, %142, %cst_56 [1] : vector<8x16xf32> to vector<8xf32>
    %144 = vector.shape_cast %143 : vector<8xf32> to vector<8x1xf32>
    %cst_57 = arith.constant 1.600000e+01 : f32
    %145 = vector.broadcast %cst_57 : f32 to vector<8x1xf32>
    %146 = arith.divf %144, %145 : vector<8x1xf32>
    %cst_58 = arith.constant 9.99999974E-6 : f32
    %147 = vector.broadcast %cst_58 : f32 to vector<8x1xf32>
    %148 = arith.addf %146, %147 : vector<8x1xf32>
    %149 = math.rsqrt %148 : vector<8x1xf32>
    %150 = vector.broadcast %149 : vector<8x1xf32> to vector<8x16xf32>
    %151 = arith.mulf %141, %150 : vector<8x16xf32>
    %152 = vector.broadcast %106 : vector<1x16xf32> to vector<8x16xf32>
    %153 = arith.mulf %151, %152 : vector<8x16xf32>
    %154 = vector.broadcast %107 : vector<1x16xf32> to vector<8x16xf32>
    %155 = arith.addf %153, %154 : vector<8x16xf32>
    %cst_59 = arith.constant dense<0.000000e+00> : vector<8x64xf32>
    %156 = tpu.matmul %155, %99, %cst_59 {dimension_numbers = #tpu.dot_dimension_numbers<[1], [0], [0], [1], [0, 0, 1, 1], [], []>} : vector<8x16xf32>, vector<16x64xf32>, vector<8x64xf32> -> vector<8x64xf32>
    %157 = vector.broadcast %104 : vector<1x64xf32> to vector<8x64xf32>
    %158 = arith.addf %156, %157 : vector<8x64xf32>
    %cst_60 = arith.constant 0.000000e+00 : f32
    %159 = vector.broadcast %cst_60 : f32 to vector<8x64xf32>
    %160 = arith.maximumf %158, %159 : vector<8x64xf32>
    %cst_61 = arith.constant dense<0.000000e+00> : vector<8x16xf32>
    %161 = tpu.matmul %160, %100, %cst_61 {dimension_numbers = #tpu.dot_dimension_numbers<[1], [0], [0], [1], [0, 0, 1, 1], [], []>} : vector<8x64xf32>, vector<64x16xf32>, vector<8x16xf32> -> vector<8x16xf32>
    %162 = vector.broadcast %105 : vector<1x16xf32> to vector<8x16xf32>
    %163 = arith.addf %161, %162 : vector<8x16xf32>
    %164 = arith.addf %155, %163 : vector<8x16xf32>
    %cst_62 = arith.constant dense<0.000000e+00> : vector<8xf32>
    %165 = vector.multi_reduction <add>, %164, %cst_62 [1] : vector<8x16xf32> to vector<8xf32>
    %166 = vector.shape_cast %165 : vector<8xf32> to vector<8x1xf32>
    %cst_63 = arith.constant 1.600000e+01 : f32
    %167 = vector.broadcast %cst_63 : f32 to vector<8x1xf32>
    %168 = arith.divf %166, %167 : vector<8x1xf32>
    %169 = vector.broadcast %168 : vector<8x1xf32> to vector<8x16xf32>
    %170 = arith.subf %164, %169 : vector<8x16xf32>
    %171 = arith.mulf %170, %170 : vector<8x16xf32>
    %cst_64 = arith.constant dense<0.000000e+00> : vector<8xf32>
    %172 = vector.multi_reduction <add>, %171, %cst_64 [1] : vector<8x16xf32> to vector<8xf32>
    %173 = vector.shape_cast %172 : vector<8xf32> to vector<8x1xf32>
    %cst_65 = arith.constant 1.600000e+01 : f32
    %174 = vector.broadcast %cst_65 : f32 to vector<8x1xf32>
    %175 = arith.divf %173, %174 : vector<8x1xf32>
    %cst_66 = arith.constant 9.99999974E-6 : f32
    %176 = vector.broadcast %cst_66 : f32 to vector<8x1xf32>
    %177 = arith.addf %175, %176 : vector<8x1xf32>
    %178 = math.rsqrt %177 : vector<8x1xf32>
    %179 = vector.broadcast %178 : vector<8x1xf32> to vector<8x16xf32>
    %180 = arith.mulf %170, %179 : vector<8x16xf32>
    %181 = vector.broadcast %108 : vector<1x16xf32> to vector<8x16xf32>
    %182 = arith.mulf %180, %181 : vector<8x16xf32>
    %183 = vector.broadcast %109 : vector<1x16xf32> to vector<8x16xf32>
    %184 = arith.addf %182, %183 : vector<8x16xf32>
    %185 = vector.extract_strided_slice %184 {offsets = [7, 0], sizes = [1, 16], strides = [1, 1]} : vector<8x16xf32> to vector<1x16xf32>
    %c0_67 = arith.constant 0 : index
    %c0_68 = arith.constant 0 : index
    %c0_69 = arith.constant 0 : index
    %186 = vector.load %arg7[%c0_67, %c0_68, %c0_69] : memref<1x1x16xf32, #tpu.memory_space<vmem>>, vector<1x1x16xf32>
    %187 = vector.shape_cast %186 : vector<1x1x16xf32> to vector<1x16xf32>
    %188 = vector.shape_cast %185 : vector<1x16xf32> to vector<1x1x16xf32>
    tpu.vector_store %arg7[%c0_67, %c0_68, %c0_69], %188 {strides = array<i32>} : memref<1x1x16xf32, #tpu.memory_space<vmem>>, vector<1x1x16xf32>,
    return
  }
  func.func @transform_0(%arg0: i32) -> (i32, i32) {
    %c0_i32 = arith.constant 0 : i32
    %c0_i32_0 = arith.constant 0 : i32
    return %arg0, %c0_i32 : i32, i32
  }
  func.func @transform_1(%arg0: i32) -> (i32, i32) {
    %c0_i32 = arith.constant 0 : i32
    %c0_i32_0 = arith.constant 0 : i32
    %c0_i32_1 = arith.constant 0 : i32
    return %c0_i32, %c0_i32_0 : i32, i32
  }
  func.func @transform_2(%arg0: i32) -> (i32, i32) {
    %c0_i32 = arith.constant 0 : i32
    %c0_i32_0 = arith.constant 0 : i32
    %c0_i32_1 = arith.constant 0 : i32
    return %c0_i32, %c0_i32_0 : i32, i32
  }
  func.func @transform_3(%arg0: i32) -> (i32, i32) {
    %c0_i32 = arith.constant 0 : i32
    %c0_i32_0 = arith.constant 0 : i32
    %c0_i32_1 = arith.constant 0 : i32
    return %c0_i32, %c0_i32_0 : i32, i32
  }
  func.func @transform_4(%arg0: i32) -> (i32, i32) {
    %c0_i32 = arith.constant 0 : i32
    %c0_i32_0 = arith.constant 0 : i32
    %c0_i32_1 = arith.constant 0 : i32
    return %c0_i32, %c0_i32_0 : i32, i32
  }
  func.func @transform_5(%arg0: i32) -> (i32, i32) {
    %c0_i32 = arith.constant 0 : i32
    %c0_i32_0 = arith.constant 0 : i32
    %c0_i32_1 = arith.constant 0 : i32
    return %c0_i32, %c0_i32_0 : i32, i32
  }
  func.func @transform_6(%arg0: i32) -> (i32, i32, i32) {
    %c0_i32 = arith.constant 0 : i32
    %c0_i32_0 = arith.constant 0 : i32
    %c0_i32_1 = arith.constant 0 : i32
    return %arg0, %c0_i32, %c0_i32_0 : i32, i32, i32
  }
}

</mosaic_0001>

<llo_original>
// kernel: tpu_custom_call.1
$region0: #{tpu_custom_call.1}
  #allocation0 [shape = 'u32[]', space=smem, size = 0x4, offset = 0x4, fixed_abs, tag = 'smem constant byte address 0x4 - core index']
  #allocation1 [shape = 'u32[144,128]{1,0:T(1,128)}', space=vmem, size = 0x12000, scoped, tag = 'internal scratch']
  %s0 = inlined_call_operand.vmem [shape: f32[16,4], index: 0, kind: input, shape index: {}]
  %s1 = inlined_call_operand.vmem [shape: f32[200,64], index: 1, kind: input, shape index: {}]
  %s2 = inlined_call_operand.vmem [shape: f32[24,64], index: 2, kind: input, shape index: {}]
  %s3 = inlined_call_operand.vmem [shape: f32[32,8], index: 3, kind: input, shape index: {}]
  %s4 = inlined_call_operand.vmem [shape: f32[32,16], index: 4, kind: input, shape index: {}]
  %s5 = inlined_call_operand.vmem [shape: f32[32,32], index: 5, kind: input, shape index: {}]
  %s6 = inlined_call_operand.hbm [shape: f32[2,1,16], index: 6, kind: output, shape index: {}]
  %s7 = sld [smem:[#allocation0]]
  $region57: #{tpu_custom_call.1} parent=0
    _
  %s9 = ssub.s32 1, %s7
  %s10 = scalar_select 0, %s9, %s7
  $region1: #{tpu_custom_call.1} parent=0
    #allocation2 [shape = 'u8[1024]{0}', space=vmem, size = 0x400, scoped, tag = 'output window, operand 0']
    #allocation3 [shape = 's32[2]{0}', space=sflag, size = 0x8, scoped, tag = 'scoped memory for tpu_custom_call.1']
    %11 = vsyncpa [#allocation3], 0
    %s12 = scalar_lea.sflag [#allocation3], 1
    %13 = vsyncpa %s12, 0
    loop: start=0, step=1, limit=4
    $region2: #{tpu_custom_call.1} parent=1 // loop_pre_header
      _
    $region3: #{tpu_custom_call.1} parent=1 // loop_header
      %s15 = sphi 0, %s19
      %p16 = scmp.ge.s32.totalorder %s15, 4
      %s25 = sphi 0, %s27
      %s28 = sphi 0, %s25
      %s29 = sphi 0, %s28
      %s45 = sphi 0, %s29
      %s49 = sphi 0, %s49
      %s51 = sphi 0, %s49
      %s52 = sphi 0, %s51
      %s66 = sphi 0, %s52
      %s70 = sphi 0, %s70
      %s72 = sphi 0, %s70
      %s73 = sphi 0, %s72
      %s87 = sphi 0, %s73
      %s91 = sphi 0, %s91
      %s93 = sphi 0, %s91
      %s94 = sphi 0, %s93
      %s108 = sphi 0, %s94
      %s112 = sphi 0, %s112
      %s114 = sphi 0, %s112
      %s115 = sphi 0, %s114
      %s129 = sphi 0, %s115
      %s133 = sphi 0, %s133
      %s135 = sphi 0, %s133
      %s136 = sphi 0, %s135
      %s150 = sphi 0, %s136
      %s156 = sphi 0, %s158
      %s159 = sphi 0, %s156
      %s160 = sphi 0, %s159
      %s176 = sphi 0, %s160
    $region4: #{tpu_custom_call.1} parent=1 // loop_header_branch
      %18 = sbr.rel (%p16) target = $region8
    $region5: #{tpu_custom_call.1} parent=1 // loop_body
      %s20 = ssub.s32 %s15, 1
      %s21 = ssub.s32 %s15, 2
      %s22 = sadd.s32 %s15, 1
      %s23 = ssub.s32 %s15, %s22
      %p24 = scmp.eq.s32.totalorder %s23, 0
      %s26 = sadd.s32 %s25, 1
      %s27 = scalar_select %p24, %s25, %s26
      %p30 = pneg %p24
      %p31 = scmp.eq.s32.totalorder %s15, 1
      %p32 = por %p30, %p31
      %p33 = scmp.ne.s32.totalorder %s25, %s28
      %p34 = scmp.eq.s32.totalorder %s15, 0
      %p35 = por %p33, %p34
      %p36 = scmp.ne.s32.totalorder %s25, %s28
      %p37 = scmp.eq.s32.totalorder %s20, 1
      %p38 = por %p36, %p37
      %p39 = scmp.ne.s32.totalorder %s28, %s29
      %p40 = scmp.eq.s32.totalorder %s20, 0
      %p41 = por %p39, %p40
      %p42 = scmp.ne.s32.totalorder %s28, %s29
      %p43 = scmp.eq.s32.totalorder %s21, 1
      %p44 = por %p42, %p43
      %p46 = scmp.ne.s32.totalorder %s29, %s45
      %p47 = scmp.eq.s32.totalorder %s21, 0
      %p48 = por %p46, %p47
      %s50 = sadd.s32 %s49, 1
      %p53 = scmp.eq.s32.totalorder %s15, 1
      %p54 = scmp.ne.s32.totalorder %s49, %s51
      %p55 = scmp.eq.s32.totalorder %s15, 0
      %p56 = por %p54, %p55
      %p57 = scmp.ne.s32.totalorder %s49, %s51
      %p58 = scmp.eq.s32.totalorder %s20, 1
      %p59 = por %p57, %p58
      %p60 = scmp.ne.s32.totalorder %s51, %s52
      %p61 = scmp.eq.s32.totalorder %s20, 0
      %p62 = por %p60, %p61
      %p63 = scmp.ne.s32.totalorder %s51, %s52
      %p64 = scmp.eq.s32.totalorder %s21, 1
      %p65 = por %p63, %p64
      %p67 = scmp.ne.s32.totalorder %s52, %s66
      %p68 = scmp.eq.s32.totalorder %s21, 0
      %p69 = por %p67, %p68
      %s71 = sadd.s32 %s70, 1
      %p74 = scmp.eq.s32.totalorder %s15, 1
      %p75 = scmp.ne.s32.totalorder %s70, %s72
      %p76 = scmp.eq.s32.totalorder %s15, 0
      %p77 = por %p75, %p76
      %p78 = scmp.ne.s32.totalorder %s70, %s72
      %p79 = scmp.eq.s32.totalorder %s20, 1
      %p80 = por %p78, %p79
      %p81 = scmp.ne.s32.totalorder %s72, %s73
      %p82 = scmp.eq.s32.totalorder %s20, 0
      %p83 = por %p81, %p82
      %p84 = scmp.ne.s32.totalorder %s72, %s73
      %p85 = scmp.eq.s32.totalorder %s21, 1
      %p86 = por %p84, %p85
      %p88 = scmp.ne.s32.totalorder %s73, %s87
      %p89 = scmp.eq.s32.totalorder %s21, 0
      %p90 = por %p88, %p89
      %s92 = sadd.s32 %s91, 1
      %p95 = scmp.eq.s32.totalorder %s15, 1
      %p96 = scmp.ne.s32.totalorder %s91, %s93
      %p97 = scmp.eq.s32.totalorder %s15, 0
      %p98 = por %p96, %p97
      %p99 = scmp.ne.s32.totalorder %s91, %s93
      %p100 = scmp.eq.s32.totalorder %s20, 1
      %p101 = por %p99, %p100
      %p102 = scmp.ne.s32.totalorder %s93, %s94
      %p103 = scmp.eq.s32.totalorder %s20, 0
      %p104 = por %p102, %p103
      %p105 = scmp.ne.s32.totalorder %s93, %s94
      %p106 = scmp.eq.s32.totalorder %s21, 1
      %p107 = por %p105, %p106
      %p109 = scmp.ne.s32.totalorder %s94, %s108
      %p110 = scmp.eq.s32.totalorder %s21, 0
      %p111 = por %p109, %p110
      %s113 = sadd.s32 %s112, 1
      %p116 = scmp.eq.s32.totalorder %s15, 1
      %p117 = scmp.ne.s32.totalorder %s112, %s114
      %p118 = scmp.eq.s32.totalorder %s15, 0
      %p119 = por %p117, %p118
      %p120 = scmp.ne.s32.totalorder %s112, %s114
      %p121 = scmp.eq.s32.totalorder %s20, 1
      %p122 = por %p120, %p121
      %p123 = scmp.ne.s32.totalorder %s114, %s115
      %p124 = scmp.eq.s32.totalorder %s20, 0
      %p125 = por %p123, %p124
      %p126 = scmp.ne.s32.totalorder %s114, %s115
      %p127 = scmp.eq.s32.totalorder %s21, 1
      %p128 = por %p126, %p127
      %p130 = scmp.ne.s32.totalorder %s115, %s129
      %p131 = scmp.eq.s32.totalorder %s21, 0
      %p132 = por %p130, %p131
      %s134 = sadd.s32 %s133, 1
      %p137 = scmp.eq.s32.totalorder %s15, 1
      %p138 = scmp.ne.s32.totalorder %s133, %s135
      %p139 = scmp.eq.s32.totalorder %s15, 0
      %p140 = por %p138, %p139
      %p141 = scmp.ne.s32.totalorder %s133, %s135
      %p142 = scmp.eq.s32.totalorder %s20, 1
      %p143 = por %p141, %p142
      %p144 = scmp.ne.s32.totalorder %s135, %s136
      %p145 = scmp.eq.s32.totalorder %s20, 0
      %p146 = por %p144, %p145
      %p147 = scmp.ne.s32.totalorder %s135, %s136
      %p148 = scmp.eq.s32.totalorder %s21, 1
      %p149 = por %p147, %p148
      %p151 = scmp.ne.s32.totalorder %s136, %s150
      %p152 = scmp.eq.s32.totalorder %s21, 0
      %p153 = por %p151, %p152
      %s154 = ssub.s32 %s15, %s22
      %p155 = scmp.eq.s32.totalorder %s154, 0
      %s157 = sadd.s32 %s156, 1
      %s158 = scalar_select %p155, %s156, %s157
      %p161 = pneg %p155
      %p162 = scmp.eq.s32.totalorder %s15, 1
      %p163 = por %p161, %p162
      %p164 = scmp.ne.s32.totalorder %s156, %s159
      %p165 = scmp.eq.s32.totalorder %s15, 0
      %p166 = por %p164, %p165
      %p167 = scmp.ne.s32.totalorder %s156, %s159
      %p168 = scmp.eq.s32.totalorder %s20, 1
      %p169 = por %p167, %p168
      %p170 = scmp.ne.s32.totalorder %s159, %s160
      %p171 = scmp.eq.s32.totalorder %s20, 0
      %p172 = por %p170, %p171
      %p173 = scmp.ne.s32.totalorder %s159, %s160
      %p174 = scmp.eq.s32.totalorder %s21, 1
      %p175 = por %p173, %p174
      %p177 = scmp.ne.s32.totalorder %s160, %s176
      %p178 = scmp.eq.s32.totalorder %s21, 0
      %p179 = por %p177, %p178
      %p180 = scmp.le.s32.totalorder 1, %s15
      %p181 = scmp.lt.s32.totalorder %s15, 3
      %p182 = pnand %p180, %p181
      %p183 = pneg %p182
      // Predicated region
      $region9: #{tpu_custom_call.1} parent=5 // pred_check
        _
      $region10: #{tpu_custom_call.1} parent=5 // pred_check_branch
        %185 = sbr.rel (%p182) target = $region12
      $region11: #{tpu_custom_call.1} parent=5 // pred_region
        %s186 = ssub.s32 %s15, 1
        // Predicated region
        $region13: #{tpu_custom_call.1} parent=11 // pred_check
          %p187 = pneg %p62
        $region14: #{tpu_custom_call.1} parent=11 // pred_check_branch
          %189 = sbr.rel (%p187) target = $region16
        $region15: #{tpu_custom_call.1} parent=11 // pred_region
          _
        $region16: #{tpu_custom_call.1} parent=11 // pred_fallthru
          _
        // Predicated region
        $region17: #{tpu_custom_call.1} parent=11 // pred_check
          %p190 = pneg %p83
        $region18: #{tpu_custom_call.1} parent=11 // pred_check_branch
          %192 = sbr.rel (%p190) target = $region20
        $region19: #{tpu_custom_call.1} parent=11 // pred_region
          _
        $region20: #{tpu_custom_call.1} parent=11 // pred_fallthru
          _
        // Predicated region
        $region21: #{tpu_custom_call.1} parent=11 // pred_check
          %p193 = pneg %p104
        $region22: #{tpu_custom_call.1} parent=11 // pred_check_branch
          %195 = sbr.rel (%p193) target = $region24
        $region23: #{tpu_custom_call.1} parent=11 // pred_region
          _
        $region24: #{tpu_custom_call.1} parent=11 // pred_fallthru
          _
        // Predicated region
        $region25: #{tpu_custom_call.1} parent=11 // pred_check
          %p196 = pneg %p125
        $region26: #{tpu_custom_call.1} parent=11 // pred_check_branch
          %198 = sbr.rel (%p196) target = $region28
        $region27: #{tpu_custom_call.1} parent=11 // pred_region
          _
        $region28: #{tpu_custom_call.1} parent=11 // pred_fallthru
          _
        // Predicated region
        $region29: #{tpu_custom_call.1} parent=11 // pred_check
          %p199 = pneg %p146
        $region30: #{tpu_custom_call.1} parent=11 // pred_check_branch
          %201 = sbr.rel (%p199) target = $region32
        $region31: #{tpu_custom_call.1} parent=11 // pred_region
          _
        $region32: #{tpu_custom_call.1} parent=11 // pred_fallthru
          _
      $region12: #{tpu_custom_call.1} parent=5 // pred_fallthru
        _
      %p202 = scmp.lt.s32.totalorder %s15, 2
      // Predicated region
      $region33: #{tpu_custom_call.1} parent=5 // pred_check
        %p203 = pneg %p202
      $region34: #{tpu_custom_call.1} parent=5 // pred_check_branch
        %205 = sbr.rel (%p203) target = $region36
      $region35: #{tpu_custom_call.1} parent=5 // pred_region
        // Predicated region
        $region37: #{tpu_custom_call.1} parent=35 // pred_check
          %p206 = pneg %p35
        $region38: #{tpu_custom_call.1} parent=35 // pred_check_branch
          %208 = sbr.rel (%p206) target = $region40
        $region39: #{tpu_custom_call.1} parent=35 // pred_region
          %p209 = scmp.lt.s32.totalorder %s15, 1
          %s210 = scalar_select %p209, %s15, 1
          %s211 = smul.addr %s210, 8
          %s212 = scalar_lea.vmem %s0, %s211
        $region40: #{tpu_custom_call.1} parent=35 // pred_fallthru
          _
      $region36: #{tpu_custom_call.1} parent=5 // pred_fallthru
        _
      %p213 = scmp.le.s32.totalorder 1, %s15
      %p214 = scmp.lt.s32.totalorder %s15, 3
      %p215 = pnand %p213, %p214
      %p216 = pneg %p215
      // Predicated region
      $region41: #{tpu_custom_call.1} parent=5 // pred_check
        _
      $region42: #{tpu_custom_call.1} parent=5 // pred_check_branch
        %218 = sbr.rel (%p215) target = $region44
      $region43: #{tpu_custom_call.1} parent=5 // pred_region
        %s219 = ssub.s32 %s15, 1
        %p220 = scmp.lt.s32.totalorder %s20, 1
        %s221 = scalar_select %p220, %s20, 1
        %s222 = smul.addr %s221, 8
        %s223 = scalar_lea.vmem %s0, %s222
        %p224 = pneg %p41
        %p225 = pneg %p38
        %p226 = pneg %p62
        %p227 = pneg %p59
        %p228 = pneg %p83
        %p229 = pneg %p80
        %p230 = pneg %p104
        %p231 = pneg %p101
        %p232 = pneg %p125
        %p233 = pneg %p122
        %p234 = pneg %p146
        %p235 = pneg %p143
        %p236 = pneg %p172
        %p237 = pneg %p169
        %s238 = sand.u32 %s159, 1
        %s239 = scalar_lea.sflag [#allocation3], %s238
        %s240 = sand.u32 %s159, 1
        %s241 = scalar_lea.vmem [#allocation2], %s240
        %p242 = scmp.lt.s32.totalorder %s20, 1
        %s243 = scalar_select %p242, %s20, 1
        %s244 = smul.addr %s243, 8
        %s245 = scalar_lea.vmem %s0, %s244
        %v246 = vld [vmem:[%s3] sm:$0xff]
        %v247 = vld [vmem:[%s3 + $0x8] sm:$0xff]
        %v248 = vld [vmem:[%s3 + $0x10] sm:$0xff]
        %v249 = vld [vmem:[%s3 + $0x18] sm:$0xff]
        %v250 = vld [vmem:[%s4] sm:$0xff]
        %v251 = vld [vmem:[%s4 + $0x8] sm:$0xff]
        %v252 = vld [vmem:[%s4 + $0x10] sm:$0xff]
        %v253 = vld [vmem:[%s4 + $0x18] sm:$0xff]
        %v254 = vld [vmem:[%s5] sm:$0xff]
        %v255 = vld [vmem:[%s5 + $0x8] sm:$0xff]
        %v256 = vld [vmem:[%s5 + $0x10] sm:$0xff]
        %v257 = vld [vmem:[%s5 + $0x18] sm:$0xff]
        %v258 = vld [vmem:[%s245] sm:$0xff]
        %v259 = vld [vmem:[%s1] sm:$0xf]
        %v260 = vld [vmem:[%s2] sm:$0x1]
        %v261 = vlaneseq
        %v262 = vshrl.u32 %v261, 7
        %v263 = vsub.s32 0, %v262
        %v264 = vrot.slane %v260, %v263
        %vm265 = vcmask 31744
        %v267 = vsel %vm265, %v258, 0
        %vm269 = vcmask 1043456
        %v271 = vsel %vm269, %v259, 0
        %273 = vmatprep.subr.mxu0 0.0
        %274 = vmatpush1.msra.mxu0 %v271
        %275 = vmatprep.subr.mxu0 0.0
        %276 = vmatpush1.msra.mxu0 0.0
        %277 = vmatprep.subr.mxu0 0.0
        %278 = vmatpush1.msra.mxu0 0.0
        %279 = vmatprep.subr.mxu0 0.0
        %280 = vmatpush1.msra.mxu0 0.0
        %281 = vmatprep.subr.mxu0 0.0
        %282 = vmatpush1.msra.mxu0 0.0
        %283 = vmatprep.subr.mxu0 0.0
        %284 = vmatpush1.msra.mxu0 0.0
        %285 = vmatprep.subr.mxu0 0.0
        %286 = vmatpush1.msra.mxu0 0.0
        %287 = vmatprep.subr.mxu0 0.0
        %288 = vmatpush1.msra.mxu0 0.0
        %289 = vmatprep.subr.mxu0 0.0
        %290 = vmatpush1.msra.mxu0 0.0
        %291 = vmatprep.subr.mxu0 0.0
        %292 = vmatpush1.msra.mxu0 0.0
        %293 = vmatprep.subr.mxu0 0.0
        %294 = vmatpush1.msra.mxu0 0.0
        %295 = vmatprep.subr.mxu0 0.0
        %296 = vmatpush1.msra.mxu0 0.0
        %297 = vmatprep.subr.mxu0 0.0
        %298 = vmatpush1.msra.mxu0 0.0
        %299 = vmatprep.subr.mxu0 0.0
        %300 = vmatpush1.msra.mxu0 0.0
        %301 = vmatprep.subr.mxu0 0.0
        %302 = vmatpush1.msra.mxu0 0.0
        %303 = vmatprep.subr.mxu0 0.0
        %304 = vmatpush1.msra.mxu0 0.0
        %305 = vmatprep.subr.mxu0 0.0
        %306 = vmatpush1.msra.mxu0 0.0
        %307 = vmatprep.subr.mxu0 0.0
        %308 = vmatpush1.msra.mxu0 0.0
        %309 = vmatprep.subr.mxu0 0.0
        %310 = vmatpush1.msra.mxu0 0.0
        %311 = vmatprep.subr.mxu0 0.0
        %312 = vmatpush1.msra.mxu0 0.0
        %313 = vmatprep.subr.mxu0 0.0
        %314 = vmatpush1.msra.mxu0 0.0
        %315 = vmatprep.subr.mxu0 0.0
        %316 = vmatpush1.msra.mxu0 0.0
        %317 = vmatprep.subr.mxu0 0.0
        %318 = vmatpush1.msra.mxu0 0.0
        %319 = vmatprep.subr.mxu0 0.0
        %320 = vmatpush1.msra.mxu0 0.0
        %321 = vmatprep.subr.mxu0 0.0
        %322 = vmatpush1.msra.mxu0 0.0
        %323 = vmatprep.subr.mxu0 0.0
        %324 = vmatpush1.msra.mxu0 0.0
        %325 = vmatprep.subr.mxu0 0.0
        %326 = vmatpush1.msra.mxu0 0.0
        %327 = vmatprep.subr.mxu0 0.0
        %328 = vmatpush1.msra.mxu0 0.0
        %329 = vmatprep.subr.mxu0 0.0
        %330 = vmatpush1.msra.mxu0 0.0
        %331 = vmatprep.subr.mxu0 0.0
        %332 = vmatpush1.msra.mxu0 0.0
        %333 = vmatprep.subr.mxu0 0.0
        %334 = vmatpush1.msra.mxu0 0.0
        %335 = vmatprep.subr.mxu0 0.0
        %336 = vmatpush1.msra.mxu0 0.0
        %337 = vmatprep.mubr.f32.mxu0 0.0
        %338 = vmatmul.mubr.f32.gmra.mrb[0].mxu0 %v267
        %v339 = vpop.f32.mrb[0].mxu0
        %v340 = vadd.f32 %v264, %v339
        %v341 = vpop.f32.mrb[0].mxu0
        %342 = vdwg.mxu0
        %v343 = vld [vmem:[%s1 + $0x8] sm:$0xff]
        %v344 = vld [vmem:[%s1 + $0x10] sm:$0xff]
        %v345 = vld [vmem:[%s1 + $0x18] sm:$0xff]
        %v346 = vld [vmem:[%s1 + $0x20] sm:$0xff]
        %v347 = vld [vmem:[%s1 + $0x28] sm:$0xff]
        %v348 = vld [vmem:[%s1 + $0x30] sm:$0xff]
        %v349 = vld [vmem:[%s1 + $0x38] sm:$0xff]
        %v350 = vld [vmem:[%s1 + $0x40] sm:$0xff]
        %v351 = vld [vmem:[%s1 + $0x48] sm:$0xff]
        %v352 = vld [vmem:[%s1 + $0x50] sm:$0xff]
        %v353 = vld [vmem:[%s1 + $0x58] sm:$0xff]
        %v354 = vld [vmem:[%s1 + $0x60] sm:$0xff]
        %v355 = vld [vmem:[%s2 + $0x8] sm:$0xff]
        %v356 = vlaneseq
        %v357 = vshrl.u32 %v356, 7
        %v358 = vsub.s32 0, %v357
        %v359 = vrot.slane %v355, %v358
        %vm360 = vcmask 130048
        %v362 = vsel %vm360, %v340, 0
        %364 = vmatprep.subr.mxu0 0.0
        %365 = vmatpush1.msra.mxu0 %v343
        %366 = vmatprep.subr.mxu0 0.0
        %367 = vmatpush1.msra.mxu0 %v344
        %368 = vmatprep.subr.mxu0 0.0
        %369 = vmatpush1.msra.mxu0 0.0
        %370 = vmatprep.subr.mxu0 0.0
        %371 = vmatpush1.msra.mxu0 0.0
        %372 = vmatprep.subr.mxu0 0.0
        %373 = vmatpush1.msra.mxu0 0.0
        %374 = vmatprep.subr.mxu0 0.0
        %375 = vmatpush1.msra.mxu0 0.0
        %376 = vmatprep.subr.mxu0 0.0
        %377 = vmatpush1.msra.mxu0 0.0
        %378 = vmatprep.subr.mxu0 0.0
        %379 = vmatpush1.msra.mxu0 0.0
        %380 = vmatprep.subr.mxu0 0.0
        %381 = vmatpush1.msra.mxu0 0.0
        %382 = vmatprep.subr.mxu0 0.0
        %383 = vmatpush1.msra.mxu0 0.0
        %384 = vmatprep.subr.mxu0 0.0
        %385 = vmatpush1.msra.mxu0 0.0
        %386 = vmatprep.subr.mxu0 0.0
        %387 = vmatpush1.msra.mxu0 0.0
        %388 = vmatprep.subr.mxu0 0.0
        %389 = vmatpush1.msra.mxu0 0.0
        %390 = vmatprep.subr.mxu0 0.0
        %391 = vmatpush1.msra.mxu0 0.0
        %392 = vmatprep.subr.mxu0 0.0
        %393 = vmatpush1.msra.mxu0 0.0
        %394 = vmatprep.subr.mxu0 0.0
        %395 = vmatpush1.msra.mxu0 0.0
        %396 = vmatprep.subr.mxu0 0.0
        %397 = vmatpush1.msra.mxu0 0.0
        %398 = vmatprep.subr.mxu0 0.0
        %399 = vmatpush1.msra.mxu0 0.0
        %400 = vmatprep.subr.mxu0 0.0
        %401 = vmatpush1.msra.mxu0 0.0
        %402 = vmatprep.subr.mxu0 0.0
        %403 = vmatpush1.msra.mxu0 0.0
        %404 = vmatprep.subr.mxu0 0.0
        %405 = vmatpush1.msra.mxu0 0.0
        %406 = vmatprep.subr.mxu0 0.0
        %407 = vmatpush1.msra.mxu0 0.0
        %408 = vmatprep.subr.mxu0 0.0
        %409 = vmatpush1.msra.mxu0 0.0
        %410 = vmatprep.subr.mxu0 0.0
        %411 = vmatpush1.msra.mxu0 0.0
        %412 = vmatprep.subr.mxu0 0.0
        %413 = vmatpush1.msra.mxu0 0.0
        %414 = vmatprep.subr.mxu0 0.0
        %415 = vmatpush1.msra.mxu0 0.0
        %416 = vmatprep.subr.mxu0 0.0
        %417 = vmatpush1.msra.mxu0 0.0
        %418 = vmatprep.subr.mxu0 0.0
        %419 = vmatpush1.msra.mxu0 0.0
        %420 = vmatprep.subr.mxu0 0.0
        %421 = vmatpush1.msra.mxu0 0.0
        %422 = vmatprep.subr.mxu0 0.0
        %423 = vmatpush1.msra.mxu0 0.0
        %424 = vmatprep.subr.mxu0 0.0
        %425 = vmatpush1.msra.mxu0 0.0
        %426 = vmatprep.subr.mxu0 0.0
        %427 = vmatpush1.msra.mxu0 0.0
        %428 = vmatprep.mubr.f32.mxu0 0.0
        %429 = vmatmul.mubr.f32.gmra.mrb[0].mxu0 %v362
        %v430 = vpop.f32.mrb[0].mxu0
        %v431 = vadd.f32 %v359, %v430
        %v432 = vpop.f32.mrb[0].mxu0
        %433 = vdwg.mxu0
        %435 = vrot.lane.b32.xlu0 %v431, 112
        %v436 = vpop.permute.xlu0 %435
        %vm438 = vcmask 64512
        %v440 = vsel %vm438, %v246, 0
        %v443 = vsel %vm438, %v247, 0
        %v446 = vsel %vm438, %v248, 0
        %v449 = vsel %vm438, %v249, 0
        %451 = vmatprep.subr.mxu0 0.0
        %452 = vmatpush1.msra.mxu0 %v436
        %453 = vmatprep.subr.mxu0 0.0
        %454 = vmatpush1.msra.mxu0 0.0
        %455 = vmatprep.subr.mxu0 0.0
        %456 = vmatpush1.msra.mxu0 0.0
        %457 = vmatprep.subr.mxu0 0.0
        %458 = vmatpush1.msra.mxu0 0.0
        %459 = vmatprep.subr.mxu0 0.0
        %460 = vmatpush1.msra.mxu0 0.0
        %461 = vmatprep.subr.mxu0 0.0
        %462 = vmatpush1.msra.mxu0 0.0
        %463 = vmatprep.subr.mxu0 0.0
        %464 = vmatpush1.msra.mxu0 0.0
        %465 = vmatprep.subr.mxu0 0.0
        %466 = vmatpush1.msra.mxu0 0.0
        %467 = vmatprep.subr.mxu0 0.0
        %468 = vmatpush1.msra.mxu0 0.0
        %469 = vmatprep.subr.mxu0 0.0
        %470 = vmatpush1.msra.mxu0 0.0
        %471 = vmatprep.subr.mxu0 0.0
        %472 = vmatpush1.msra.mxu0 0.0
        %473 = vmatprep.subr.mxu0 0.0
        %474 = vmatpush1.msra.mxu0 0.0
        %475 = vmatprep.subr.mxu0 0.0
        %476 = vmatpush1.msra.mxu0 0.0
        %477 = vmatprep.subr.mxu0 0.0
        %478 = vmatpush1.msra.mxu0 0.0
        %479 = vmatprep.subr.mxu0 0.0
        %480 = vmatpush1.msra.mxu0 0.0
        %481 = vmatprep.subr.mxu0 0.0
        %482 = vmatpush1.msra.mxu0 0.0
        %483 = vmatprep.subr.mxu0 0.0
        %484 = vmatpush1.msra.mxu0 0.0
        %485 = vmatprep.subr.mxu0 0.0
        %486 = vmatpush1.msra.mxu0 0.0
        %487 = vmatprep.subr.mxu0 0.0
        %488 = vmatpush1.msra.mxu0 0.0
        %489 = vmatprep.subr.mxu0 0.0
        %490 = vmatpush1.msra.mxu0 0.0
        %491 = vmatprep.subr.mxu0 0.0
        %492 = vmatpush1.msra.mxu0 0.0
        %493 = vmatprep.subr.mxu0 0.0
        %494 = vmatpush1.msra.mxu0 0.0
        %495 = vmatprep.subr.mxu0 0.0
        %496 = vmatpush1.msra.mxu0 0.0
        %497 = vmatprep.subr.mxu0 0.0
        %498 = vmatpush1.msra.mxu0 0.0
        %499 = vmatprep.subr.mxu0 0.0
        %500 = vmatpush1.msra.mxu0 0.0
        %501 = vmatprep.subr.mxu0 0.0
        %502 = vmatpush1.msra.mxu0 0.0
        %503 = vmatprep.subr.mxu0 0.0
        %504 = vmatpush1.msra.mxu0 0.0
        %505 = vmatprep.subr.mxu0 0.0
        %506 = vmatpush1.msra.mxu0 0.0
        %507 = vmatprep.subr.mxu0 0.0
        %508 = vmatpush1.msra.mxu0 0.0
        %509 = vmatprep.subr.mxu0 0.0
        %510 = vmatpush1.msra.mxu0 0.0
        %511 = vmatprep.subr.mxu0 0.0
        %512 = vmatpush1.msra.mxu0 0.0
        %513 = vmatprep.subr.mxu0 0.0
        %514 = vmatpush1.msra.mxu0 0.0
        %515 = vmatprep.mubr.f32.mxu0 0.0
        %516 = vmatmul.mubr.f32.gmra.mrb[0].mxu0 %v440
        %v517 = vpop.f32.mrb[0].mxu0
        %v518 = vadd.f32 0.0, %v517
        %v519 = vpop.f32.mrb[0].mxu0
        %520 = vmatprep.mubr.f32.mxu0 0.0
        %521 = vmatmul.mubr.f32.gmra.mrb[0].mxu0 %v443
        %v522 = vpop.f32.mrb[0].mxu0
        %v523 = vadd.f32 0.0, %v522
        %v524 = vpop.f32.mrb[0].mxu0
        %525 = vmatprep.mubr.f32.mxu0 0.0
        %526 = vmatmul.mubr.f32.gmra.mrb[0].mxu0 %v446
        %v527 = vpop.f32.mrb[0].mxu0
        %v528 = vadd.f32 0.0, %v527
        %v529 = vpop.f32.mrb[0].mxu0
        %530 = vmatprep.mubr.f32.mxu0 0.0
        %531 = vmatmul.mubr.f32.gmra.mrb[0].mxu0 %v449
        %v532 = vpop.f32.mrb[0].mxu0
        %v533 = vadd.f32 0.0, %v532
        %v534 = vpop.f32.mrb[0].mxu0
        %535 = vdwg.mxu0
        %v536 = vmul.f32 %v518, %v250
        %v537 = vmul.f32 %v523, %v251
        %v538 = vmul.f32 %v528, %v252
        %v539 = vmul.f32 %v533, %v253
        %540 = vrot.lane.b32.xlu0 %v431, 96
        %v541 = vpop.permute.xlu0 %540
        %543 = vmatprep.subr.mxu0 0.0
        %544 = vmatpush1.msra.mxu0 %v541
        %545 = vmatprep.subr.mxu0 0.0
        %546 = vmatpush1.msra.mxu0 0.0
        %547 = vmatprep.subr.mxu0 0.0
        %548 = vmatpush1.msra.mxu0 0.0
        %549 = vmatprep.subr.mxu0 0.0
        %550 = vmatpush1.msra.mxu0 0.0
        %551 = vmatprep.subr.mxu0 0.0
        %552 = vmatpush1.msra.mxu0 0.0
        %553 = vmatprep.subr.mxu0 0.0
        %554 = vmatpush1.msra.mxu0 0.0
        %555 = vmatprep.subr.mxu0 0.0
        %556 = vmatpush1.msra.mxu0 0.0
        %557 = vmatprep.subr.mxu0 0.0
        %558 = vmatpush1.msra.mxu0 0.0
        %559 = vmatprep.subr.mxu0 0.0
        %560 = vmatpush1.msra.mxu0 0.0
        %561 = vmatprep.subr.mxu0 0.0
        %562 = vmatpush1.msra.mxu0 0.0
        %563 = vmatprep.subr.mxu0 0.0
        %564 = vmatpush1.msra.mxu0 0.0
        %565 = vmatprep.subr.mxu0 0.0
        %566 = vmatpush1.msra.mxu0 0.0
        %567 = vmatprep.subr.mxu0 0.0
        %568 = vmatpush1.msra.mxu0 0.0
        %569 = vmatprep.subr.mxu0 0.0
        %570 = vmatpush1.msra.mxu0 0.0
        %571 = vmatprep.subr.mxu0 0.0
        %572 = vmatpush1.msra.mxu0 0.0
        %573 = vmatprep.subr.mxu0 0.0
        %574 = vmatpush1.msra.mxu0 0.0
        %575 = vmatprep.subr.mxu0 0.0
        %576 = vmatpush1.msra.mxu0 0.0
        %577 = vmatprep.subr.mxu0 0.0
        %578 = vmatpush1.msra.mxu0 0.0
        %579 = vmatprep.subr.mxu0 0.0
        %580 = vmatpush1.msra.mxu0 0.0
        %581 = vmatprep.subr.mxu0 0.0
        %582 = vmatpush1.msra.mxu0 0.0
        %583 = vmatprep.subr.mxu0 0.0
        %584 = vmatpush1.msra.mxu0 0.0
        %585 = vmatprep.subr.mxu0 0.0
        %586 = vmatpush1.msra.mxu0 0.0
        %587 = vmatprep.subr.mxu0 0.0
        %588 = vmatpush1.msra.mxu0 0.0
        %589 = vmatprep.subr.mxu0 0.0
        %590 = vmatpush1.msra.mxu0 0.0
        %591 = vmatprep.subr.mxu0 0.0
        %592 = vmatpush1.msra.mxu0 0.0
        %593 = vmatprep.subr.mxu0 0.0
        %594 = vmatpush1.msra.mxu0 0.0
        %595 = vmatprep.subr.mxu0 0.0
        %596 = vmatpush1.msra.mxu0 0.0
        %597 = vmatprep.subr.mxu0 0.0
        %598 = vmatpush1.msra.mxu0 0.0
        %599 = vmatprep.subr.mxu0 0.0
        %600 = vmatpush1.msra.mxu0 0.0
        %601 = vmatprep.subr.mxu0 0.0
        %602 = vmatpush1.msra.mxu0 0.0
        %603 = vmatprep.subr.mxu0 0.0
        %604 = vmatpush1.msra.mxu0 0.0
        %605 = vmatprep.subr.mxu0 0.0
        %606 = vmatpush1.msra.mxu0 0.0
        %607 = vmatprep.mubr.f32.mxu0 0.0
        %608 = vmatmul.mubr.f32.gmra.mrb[0].mxu0 %v440
        %v609 = vpop.f32.mrb[0].mxu0
        %v610 = vadd.f32 0.0, %v609
        %v611 = vpop.f32.mrb[0].mxu0
        %612 = vmatprep.mubr.f32.mxu0 0.0
        %613 = vmatmul.mubr.f32.gmra.mrb[0].mxu0 %v443
        %v614 = vpop.f32.mrb[0].mxu0
        %v615 = vadd.f32 0.0, %v614
        %v616 = vpop.f32.mrb[0].mxu0
        %617 = vmatprep.mubr.f32.mxu0 0.0
        %618 = vmatmul.mubr.f32.gmra.mrb[0].mxu0 %v446
        %v619 = vpop.f32.mrb[0].mxu0
        %v620 = vadd.f32 0.0, %v619
        %v621 = vpop.f32.mrb[0].mxu0
        %622 = vmatprep.mubr.f32.mxu0 0.0
        %623 = vmatmul.mubr.f32.gmra.mrb[0].mxu0 %v449
        %v624 = vpop.f32.mrb[0].mxu0
        %v625 = vadd.f32 0.0, %v624
        %v626 = vpop.f32.mrb[0].mxu0
        %627 = vdwg.mxu0
        %v628 = vmul.f32 %v610, %v250
        %v629 = vmul.f32 %v615, %v251
        %v630 = vmul.f32 %v620, %v252
        %v631 = vmul.f32 %v625, %v253
        %v632 = vsel %vm360, %v431, 0
        %v635 = vsel %vm360, %v536, 0
        %v638 = vsel %vm360, %v537, 0
        %v641 = vsel %vm360, %v538, 0
        %v644 = vsel %vm360, %v539, 0
        %646 = vmatprep.subr.mxu0 0.0
        %647 = vmatpush1.xpose.msra.mxu0 %v635
        %648 = vmatprep.subr.mxu0 0.0
        %649 = vmatpush1.xpose.msra.mxu0 %v638
        %650 = vmatprep.subr.mxu0 0.0
        %651 = vmatpush1.xpose.msra.mxu0 %v641
        %652 = vmatprep.subr.mxu0 0.0
        %653 = vmatpush1.xpose.msra.mxu0 %v644
        %654 = vmatprep.subr.mxu0 0.0
        %655 = vmatpush1.xpose.msra.mxu0 0.0
        %656 = vmatprep.subr.mxu0 0.0
        %657 = vmatpush1.xpose.msra.mxu0 0.0
        %658 = vmatprep.subr.mxu0 0.0
        %659 = vmatpush1.xpose.msra.mxu0 0.0
        %660 = vmatprep.subr.mxu0 0.0
        %661 = vmatpush1.xpose.msra.mxu0 0.0
        %662 = vmatprep.subr.mxu0 0.0
        %663 = vmatpush1.xpose.msra.mxu0 0.0
        %664 = vmatprep.subr.mxu0 0.0
        %665 = vmatpush1.xpose.msra.mxu0 0.0
        %666 = vmatprep.subr.mxu0 0.0
        %667 = vmatpush1.xpose.msra.mxu0 0.0
        %668 = vmatprep.subr.mxu0 0.0
        %669 = vmatpush1.xpose.msra.mxu0 0.0
        %670 = vmatprep.subr.mxu0 0.0
        %671 = vmatpush1.xpose.msra.mxu0 0.0
        %672 = vmatprep.subr.mxu0 0.0
        %673 = vmatpush1.xpose.msra.mxu0 0.0
        %674 = vmatprep.subr.mxu0 0.0
        %675 = vmatpush1.xpose.msra.mxu0 0.0
        %676 = vmatprep.subr.mxu0 0.0
        %677 = vmatpush1.xpose.msra.mxu0 0.0
        %678 = vmatprep.subr.mxu0 0.0
        %679 = vmatpush1.xpose.msra.mxu0 0.0
        %680 = vmatprep.subr.mxu0 0.0
        %681 = vmatpush1.xpose.msra.mxu0 0.0
        %682 = vmatprep.subr.mxu0 0.0
        %683 = vmatpush1.xpose.msra.mxu0 0.0
        %684 = vmatprep.subr.mxu0 0.0
        %685 = vmatpush1.xpose.msra.mxu0 0.0
        %686 = vmatprep.subr.mxu0 0.0
        %687 = vmatpush1.xpose.msra.mxu0 0.0
        %688 = vmatprep.subr.mxu0 0.0
        %689 = vmatpush1.xpose.msra.mxu0 0.0
        %690 = vmatprep.subr.mxu0 0.0
        %691 = vmatpush1.xpose.msra.mxu0 0.0
        %692 = vmatprep.subr.mxu0 0.0
        %693 = vmatpush1.xpose.msra.mxu0 0.0
        %694 = vmatprep.subr.mxu0 0.0
        %695 = vmatpush1.xpose.msra.mxu0 0.0
        %696 = vmatprep.subr.mxu0 0.0
        %697 = vmatpush1.xpose.msra.mxu0 0.0
        %698 = vmatprep.subr.mxu0 0.0
        %699 = vmatpush1.xpose.msra.mxu0 0.0
        %700 = vmatprep.subr.mxu0 0.0
        %701 = vmatpush1.xpose.msra.mxu0 0.0
        %702 = vmatprep.subr.mxu0 0.0
        %703 = vmatpush1.xpose.msra.mxu0 0.0
        %704 = vmatprep.subr.mxu0 0.0
        %705 = vmatpush1.xpose.msra.mxu0 0.0
        %706 = vmatprep.subr.mxu0 0.0
        %707 = vmatpush1.xpose.msra.mxu0 0.0
        %708 = vmatprep.subr.mxu0 0.0
        %709 = vmatpush1.xpose.msra.mxu0 0.0
        %710 = vmatprep.mubr.f32.mxu0 0.0
        %711 = vmatmul.mubr.f32.gmra.mrb[0].mxu0 %v632
        %v712 = vpop.f32.mrb[0].mxu0
        %v713 = vadd.f32 0.0, %v712
        %v714 = vpop.f32.mrb[0].mxu0
        %715 = vdwg.mxu0
        %v716 = vmul.f32 %v713, 0.5
        %vm717 = vcmask 261120
        %v718 = vsel %vm717, %v716, -inf
        %719 = vmax.xlane.f32.xlu0 %v718
        %v720 = vpop.xlane.xlu0 %719
        %v721 = vsub.f32 %v716, %v720
        %v722 = vmul.f32 %v721, 1.442695
        %v723 = vpow.pop %v722
        %v725 = vsel %vm717, %v723, 0
        %727 = vmatprep.subr.mxu0 0.0
        %728 = vmatpush1.msra.mxu0 %v254
        %729 = vmatprep.subr.mxu0 0.0
        %730 = vmatpush1.msra.mxu0 %v255
        %731 = vmatprep.subr.mxu0 0.0
        %732 = vmatpush1.msra.mxu0 %v256
        %733 = vmatprep.subr.mxu0 0.0
        %734 = vmatpush1.msra.mxu0 %v257
        %735 = vmatprep.subr.mxu0 0.0
        %736 = vmatpush1.msra.mxu0 0.0
        %737 = vmatprep.subr.mxu0 0.0
        %738 = vmatpush1.msra.mxu0 0.0
        %739 = vmatprep.subr.mxu0 0.0
        %740 = vmatpush1.msra.mxu0 0.0
        %741 = vmatprep.subr.mxu0 0.0
        %742 = vmatpush1.msra.mxu0 0.0
        %743 = vmatprep.subr.mxu0 0.0
        %744 = vmatpush1.msra.mxu0 0.0
        %745 = vmatprep.subr.mxu0 0.0
        %746 = vmatpush1.msra.mxu0 0.0
        %747 = vmatprep.subr.mxu0 0.0
        %748 = vmatpush1.msra.mxu0 0.0
        %749 = vmatprep.subr.mxu0 0.0
        %750 = vmatpush1.msra.mxu0 0.0
        %751 = vmatprep.subr.mxu0 0.0
        %752 = vmatpush1.msra.mxu0 0.0
        %753 = vmatprep.subr.mxu0 0.0
        %754 = vmatpush1.msra.mxu0 0.0
        %755 = vmatprep.subr.mxu0 0.0
        %756 = vmatpush1.msra.mxu0 0.0
        %757 = vmatprep.subr.mxu0 0.0
        %758 = vmatpush1.msra.mxu0 0.0
        %759 = vmatprep.subr.mxu0 0.0
        %760 = vmatpush1.msra.mxu0 0.0
        %761 = vmatprep.subr.mxu0 0.0
        %762 = vmatpush1.msra.mxu0 0.0
        %763 = vmatprep.subr.mxu0 0.0
        %764 = vmatpush1.msra.mxu0 0.0
        %765 = vmatprep.subr.mxu0 0.0
        %766 = vmatpush1.msra.mxu0 0.0
        %767 = vmatprep.subr.mxu0 0.0
        %768 = vmatpush1.msra.mxu0 0.0
        %769 = vmatprep.subr.mxu0 0.0
        %770 = vmatpush1.msra.mxu0 0.0
        %771 = vmatprep.subr.mxu0 0.0
        %772 = vmatpush1.msra.mxu0 0.0
        %773 = vmatprep.subr.mxu0 0.0
        %774 = vmatpush1.msra.mxu0 0.0
        %775 = vmatprep.subr.mxu0 0.0
        %776 = vmatpush1.msra.mxu0 0.0
        %777 = vmatprep.subr.mxu0 0.0
        %778 = vmatpush1.msra.mxu0 0.0
        %779 = vmatprep.subr.mxu0 0.0
        %780 = vmatpush1.msra.mxu0 0.0
        %781 = vmatprep.subr.mxu0 0.0
        %782 = vmatpush1.msra.mxu0 0.0
        %783 = vmatprep.subr.mxu0 0.0
        %784 = vmatpush1.msra.mxu0 0.0
        %785 = vmatprep.subr.mxu0 0.0
        %786 = vmatpush1.msra.mxu0 0.0
        %787 = vmatprep.subr.mxu0 0.0
        %788 = vmatpush1.msra.mxu0 0.0
        %789 = vmatprep.subr.mxu0 0.0
        %790 = vmatpush1.msra.mxu0 0.0
        %791 = vmatprep.mubr.f32.mxu0 0.0
        %792 = vmatmul.mubr.f32.gmra.mrb[0].mxu0 %v725
        %v793 = vpop.f32.mrb[0].mxu0
        %v794 = vadd.f32 0.0, %v793
        %v795 = vpop.f32.mrb[0].mxu0
        %796 = vdwg.mxu0
        %v797 = vrcp.pop %v794
        %v798 = vmul.f32 %v723, %v797
        %v800 = vsel %vm717, %v798, 0
        %802 = vmatprep.subr.mxu0 0.0
        %803 = vmatpush1.msra.mxu0 %v628
        %804 = vmatprep.subr.mxu0 0.0
        %805 = vmatpush1.msra.mxu0 %v629
        %806 = vmatprep.subr.mxu0 0.0
        %807 = vmatpush1.msra.mxu0 %v630
        %808 = vmatprep.subr.mxu0 0.0
        %809 = vmatpush1.msra.mxu0 %v631
        %810 = vmatprep.subr.mxu0 0.0
        %811 = vmatpush1.msra.mxu0 0.0
        %812 = vmatprep.subr.mxu0 0.0
        %813 = vmatpush1.msra.mxu0 0.0
        %814 = vmatprep.subr.mxu0 0.0
        %815 = vmatpush1.msra.mxu0 0.0
        %816 = vmatprep.subr.mxu0 0.0
        %817 = vmatpush1.msra.mxu0 0.0
        %818 = vmatprep.subr.mxu0 0.0
        %819 = vmatpush1.msra.mxu0 0.0
        %820 = vmatprep.subr.mxu0 0.0
        %821 = vmatpush1.msra.mxu0 0.0
        %822 = vmatprep.subr.mxu0 0.0
        %823 = vmatpush1.msra.mxu0 0.0
        %824 = vmatprep.subr.mxu0 0.0
        %825 = vmatpush1.msra.mxu0 0.0
        %826 = vmatprep.subr.mxu0 0.0
        %827 = vmatpush1.msra.mxu0 0.0
        %828 = vmatprep.subr.mxu0 0.0
        %829 = vmatpush1.msra.mxu0 0.0
        %830 = vmatprep.subr.mxu0 0.0
        %831 = vmatpush1.msra.mxu0 0.0
        %832 = vmatprep.subr.mxu0 0.0
        %833 = vmatpush1.msra.mxu0 0.0
        %834 = vmatprep.subr.mxu0 0.0
        %835 = vmatpush1.msra.mxu0 0.0
        %836 = vmatprep.subr.mxu0 0.0
        %837 = vmatpush1.msra.mxu0 0.0
        %838 = vmatprep.subr.mxu0 0.0
        %839 = vmatpush1.msra.mxu0 0.0
        %840 = vmatprep.subr.mxu0 0.0
        %841 = vmatpush1.msra.mxu0 0.0
        %842 = vmatprep.subr.mxu0 0.0
        %843 = vmatpush1.msra.mxu0 0.0
        %844 = vmatprep.subr.mxu0 0.0
        %845 = vmatpush1.msra.mxu0 0.0
        %846 = vmatprep.subr.mxu0 0.0
        %847 = vmatpush1.msra.mxu0 0.0
        %848 = vmatprep.subr.mxu0 0.0
        %849 = vmatpush1.msra.mxu0 0.0
        %850 = vmatprep.subr.mxu0 0.0
        %851 = vmatpush1.msra.mxu0 0.0
        %852 = vmatprep.subr.mxu0 0.0
        %853 = vmatpush1.msra.mxu0 0.0
        %854 = vmatprep.subr.mxu0 0.0
        %855 = vmatpush1.msra.mxu0 0.0
        %856 = vmatprep.subr.mxu0 0.0
        %857 = vmatpush1.msra.mxu0 0.0
        %858 = vmatprep.subr.mxu0 0.0
        %859 = vmatpush1.msra.mxu0 0.0
        %860 = vmatprep.subr.mxu0 0.0
        %861 = vmatpush1.msra.mxu0 0.0
        %862 = vmatprep.subr.mxu0 0.0
        %863 = vmatpush1.msra.mxu0 0.0
        %864 = vmatprep.subr.mxu0 0.0
        %865 = vmatpush1.msra.mxu0 0.0
        %866 = vmatprep.mubr.f32.mxu0 0.0
        %867 = vmatmul.mubr.f32.gmra.mrb[0].mxu0 %v800
        %v868 = vpop.f32.mrb[0].mxu0
        %v869 = vadd.f32 0.0, %v868
        %v870 = vpop.f32.mrb[0].mxu0
        %871 = vdwg.mxu0
        %874 = vrot.lane.b32.xlu0 %v343, 80
        %v875 = vpop.permute.xlu0 %874
        %876 = vrot.lane.b32.xlu0 %v344, 80
        %v877 = vpop.permute.xlu0 %876
        %881 = vrot.lane.b32.xlu0 %v359, 80
        %v882 = vpop.permute.xlu0 %881
        %v885 = vsel %vm360, %v869, 0
        %887 = vmatprep.subr.mxu0 0.0
        %888 = vmatpush1.msra.mxu0 %v875
        %889 = vmatprep.subr.mxu0 0.0
        %890 = vmatpush1.msra.mxu0 %v877
        %891 = vmatprep.subr.mxu0 0.0
        %892 = vmatpush1.msra.mxu0 0.0
        %893 = vmatprep.subr.mxu0 0.0
        %894 = vmatpush1.msra.mxu0 0.0
        %895 = vmatprep.subr.mxu0 0.0
        %896 = vmatpush1.msra.mxu0 0.0
        %897 = vmatprep.subr.mxu0 0.0
        %898 = vmatpush1.msra.mxu0 0.0
        %899 = vmatprep.subr.mxu0 0.0
        %900 = vmatpush1.msra.mxu0 0.0
        %901 = vmatprep.subr.mxu0 0.0
        %902 = vmatpush1.msra.mxu0 0.0
        %903 = vmatprep.subr.mxu0 0.0
        %904 = vmatpush1.msra.mxu0 0.0
        %905 = vmatprep.subr.mxu0 0.0
        %906 = vmatpush1.msra.mxu0 0.0
        %907 = vmatprep.subr.mxu0 0.0
        %908 = vmatpush1.msra.mxu0 0.0
        %909 = vmatprep.subr.mxu0 0.0
        %910 = vmatpush1.msra.mxu0 0.0
        %911 = vmatprep.subr.mxu0 0.0
        %912 = vmatpush1.msra.mxu0 0.0
        %913 = vmatprep.subr.mxu0 0.0
        %914 = vmatpush1.msra.mxu0 0.0
        %915 = vmatprep.subr.mxu0 0.0
        %916 = vmatpush1.msra.mxu0 0.0
        %917 = vmatprep.subr.mxu0 0.0
        %918 = vmatpush1.msra.mxu0 0.0
        %919 = vmatprep.subr.mxu0 0.0
        %920 = vmatpush1.msra.mxu0 0.0
        %921 = vmatprep.subr.mxu0 0.0
        %922 = vmatpush1.msra.mxu0 0.0
        %923 = vmatprep.subr.mxu0 0.0
        %924 = vmatpush1.msra.mxu0 0.0
        %925 = vmatprep.subr.mxu0 0.0
        %926 = vmatpush1.msra.mxu0 0.0
        %927 = vmatprep.subr.mxu0 0.0
        %928 = vmatpush1.msra.mxu0 0.0
        %929 = vmatprep.subr.mxu0 0.0
        %930 = vmatpush1.msra.mxu0 0.0
        %931 = vmatprep.subr.mxu0 0.0
        %932 = vmatpush1.msra.mxu0 0.0
        %933 = vmatprep.subr.mxu0 0.0
        %934 = vmatpush1.msra.mxu0 0.0
        %935 = vmatprep.subr.mxu0 0.0
        %936 = vmatpush1.msra.mxu0 0.0
        %937 = vmatprep.subr.mxu0 0.0
        %938 = vmatpush1.msra.mxu0 0.0
        %939 = vmatprep.subr.mxu0 0.0
        %940 = vmatpush1.msra.mxu0 0.0
        %941 = vmatprep.subr.mxu0 0.0
        %942 = vmatpush1.msra.mxu0 0.0
        %943 = vmatprep.subr.mxu0 0.0
        %944 = vmatpush1.msra.mxu0 0.0
        %945 = vmatprep.subr.mxu0 0.0
        %946 = vmatpush1.msra.mxu0 0.0
        %947 = vmatprep.subr.mxu0 0.0
        %948 = vmatpush1.msra.mxu0 0.0
        %949 = vmatprep.subr.mxu0 0.0
        %950 = vmatpush1.msra.mxu0 0.0
        %951 = vmatprep.mubr.f32.mxu0 0.0
        %952 = vmatmul.mubr.f32.gmra.mrb[0].mxu0 %v885
        %v953 = vpop.f32.mrb[0].mxu0
        %v954 = vadd.f32 %v882, %v953
        %v955 = vpop.f32.mrb[0].mxu0
        %956 = vdwg.mxu0
        %v957 = vadd.f32 %v340, %v954
        %v958 = vsel %vm360, %v957, 0.0
        %959 = vadd.xlane.f32.xlu0 %v958
        %v960 = vpop.xlane.xlu0 %959
        %v961 = vrcp.pop 16.0
        %v962 = vmul.f32 %v960, %v961
        %v963 = vsub.f32 %v957, %v962
        %v964 = vmul.f32 %v963, %v963
        %v965 = vsel %vm360, %v964, 0.0
        %966 = vadd.xlane.f32.xlu0 %v965
        %v967 = vpop.xlane.xlu0 %966
        %v968 = vmul.f32 %v967, %v961
        %v969 = vadd.f32 %v968, 1e-05
        %v970 = vrsqrt.pop %v969
        %v971 = vmul.f32 %v963, %v970
        %v972 = vlaneseq
        %v973 = vshrl.u32 %v972, 7
        %v974 = vsub.s32 2, %v973
        %v975 = vrot.slane %v355, %v974
        %977 = vrot.lane.b32.xlu0 %v975, 112
        %v978 = vpop.permute.xlu0 %977
        %v980 = vmul.f32 %v971, %v978
        %981 = vrot.lane.b32.xlu0 %v975, 96
        %v982 = vpop.permute.xlu0 %981
        %v984 = vadd.f32 %v980, %v982
        %v985 = vlaneseq
        %v986 = vshrl.u32 %v985, 7
        %v987 = vsub.s32 1, %v986
        %v988 = vrot.slane %v355, %v987
        %v990 = vsel %vm360, %v984, 0
        %992 = vmatprep.subr.mxu0 0.0
        %993 = vmatpush1.msra.mxu0 %v345
        %994 = vmatprep.subr.mxu0 0.0
        %995 = vmatpush1.msra.mxu0 %v346
        %996 = vmatprep.subr.mxu0 0.0
        %997 = vmatpush1.msra.mxu0 0.0
        %998 = vmatprep.subr.mxu0 0.0
        %999 = vmatpush1.msra.mxu0 0.0
        %1000 = vmatprep.subr.mxu0 0.0
        %1001 = vmatpush1.msra.mxu0 0.0
        %1002 = vmatprep.subr.mxu0 0.0
        %1003 = vmatpush1.msra.mxu0 0.0
        %1004 = vmatprep.subr.mxu0 0.0
        %1005 = vmatpush1.msra.mxu0 0.0
        %1006 = vmatprep.subr.mxu0 0.0
        %1007 = vmatpush1.msra.mxu0 0.0
        %1008 = vmatprep.subr.mxu0 0.0
        %1009 = vmatpush1.msra.mxu0 0.0
        %1010 = vmatprep.subr.mxu0 0.0
        %1011 = vmatpush1.msra.mxu0 0.0
        %1012 = vmatprep.subr.mxu0 0.0
        %1013 = vmatpush1.msra.mxu0 0.0
        %1014 = vmatprep.subr.mxu0 0.0
        %1015 = vmatpush1.msra.mxu0 0.0
        %1016 = vmatprep.subr.mxu0 0.0
        %1017 = vmatpush1.msra.mxu0 0.0
        %1018 = vmatprep.subr.mxu0 0.0
        %1019 = vmatpush1.msra.mxu0 0.0
        %1020 = vmatprep.subr.mxu0 0.0
        %1021 = vmatpush1.msra.mxu0 0.0
        %1022 = vmatprep.subr.mxu0 0.0
        %1023 = vmatpush1.msra.mxu0 0.0
        %1024 = vmatprep.subr.mxu0 0.0
        %1025 = vmatpush1.msra.mxu0 0.0
        %1026 = vmatprep.subr.mxu0 0.0
        %1027 = vmatpush1.msra.mxu0 0.0
        %1028 = vmatprep.subr.mxu0 0.0
        %1029 = vmatpush1.msra.mxu0 0.0
        %1030 = vmatprep.subr.mxu0 0.0
        %1031 = vmatpush1.msra.mxu0 0.0
        %1032 = vmatprep.subr.mxu0 0.0
        %1033 = vmatpush1.msra.mxu0 0.0
        %1034 = vmatprep.subr.mxu0 0.0
        %1035 = vmatpush1.msra.mxu0 0.0
        %1036 = vmatprep.subr.mxu0 0.0
        %1037 = vmatpush1.msra.mxu0 0.0
        %1038 = vmatprep.subr.mxu0 0.0
        %1039 = vmatpush1.msra.mxu0 0.0
        %1040 = vmatprep.subr.mxu0 0.0
        %1041 = vmatpush1.msra.mxu0 0.0
        %1042 = vmatprep.subr.mxu0 0.0
        %1043 = vmatpush1.msra.mxu0 0.0
        %1044 = vmatprep.subr.mxu0 0.0
        %1045 = vmatpush1.msra.mxu0 0.0
        %1046 = vmatprep.subr.mxu0 0.0
        %1047 = vmatpush1.msra.mxu0 0.0
        %1048 = vmatprep.subr.mxu0 0.0
        %1049 = vmatpush1.msra.mxu0 0.0
        %1050 = vmatprep.subr.mxu0 0.0
        %1051 = vmatpush1.msra.mxu0 0.0
        %1052 = vmatprep.subr.mxu0 0.0
        %1053 = vmatpush1.msra.mxu0 0.0
        %1054 = vmatprep.subr.mxu0 0.0
        %1055 = vmatpush1.msra.mxu0 0.0
        %1056 = vmatprep.mubr.f32.mxu0 0.0
        %1057 = vmatmul.mubr.f32.gmra.mrb[0].mxu0 %v990
        %v1058 = vpop.f32.mrb[0].mxu0
        %v1059 = vadd.f32 %v988, %v1058
        %v1060 = vpop.f32.mrb[0].mxu0
        %1061 = vdwg.mxu0
        %v1062 = vmax.f32 %v1059, 0.0
        %vm1063 = vcmask 523264
        %v1065 = vsel %vm1063, %v1062, 0
        %1067 = vmatprep.subr.mxu0 0.0
        %1068 = vmatpush1.msra.mxu0 %v347
        %1069 = vmatprep.subr.mxu0 0.0
        %1070 = vmatpush1.msra.mxu0 %v348
        %1071 = vmatprep.subr.mxu0 0.0
        %1072 = vmatpush1.msra.mxu0 %v349
        %1073 = vmatprep.subr.mxu0 0.0
        %1074 = vmatpush1.msra.mxu0 %v350
        %1075 = vmatprep.subr.mxu0 0.0
        %1076 = vmatpush1.msra.mxu0 %v351
        %1077 = vmatprep.subr.mxu0 0.0
        %1078 = vmatpush1.msra.mxu0 %v352
        %1079 = vmatprep.subr.mxu0 0.0
        %1080 = vmatpush1.msra.mxu0 %v353
        %1081 = vmatprep.subr.mxu0 0.0
        %1082 = vmatpush1.msra.mxu0 %v354
        %1083 = vmatprep.subr.mxu0 0.0
        %1084 = vmatpush1.msra.mxu0 0.0
        %1085 = vmatprep.subr.mxu0 0.0
        %1086 = vmatpush1.msra.mxu0 0.0
        %1087 = vmatprep.subr.mxu0 0.0
        %1088 = vmatpush1.msra.mxu0 0.0
        %1089 = vmatprep.subr.mxu0 0.0
        %1090 = vmatpush1.msra.mxu0 0.0
        %1091 = vmatprep.subr.mxu0 0.0
        %1092 = vmatpush1.msra.mxu0 0.0
        %1093 = vmatprep.subr.mxu0 0.0
        %1094 = vmatpush1.msra.mxu0 0.0
        %1095 = vmatprep.subr.mxu0 0.0
        %1096 = vmatpush1.msra.mxu0 0.0
        %1097 = vmatprep.subr.mxu0 0.0
        %1098 = vmatpush1.msra.mxu0 0.0
        %1099 = vmatprep.subr.mxu0 0.0
        %1100 = vmatpush1.msra.mxu0 0.0
        %1101 = vmatprep.subr.mxu0 0.0
        %1102 = vmatpush1.msra.mxu0 0.0
        %1103 = vmatprep.subr.mxu0 0.0
        %1104 = vmatpush1.msra.mxu0 0.0
        %1105 = vmatprep.subr.mxu0 0.0
        %1106 = vmatpush1.msra.mxu0 0.0
        %1107 = vmatprep.subr.mxu0 0.0
        %1108 = vmatpush1.msra.mxu0 0.0
        %1109 = vmatprep.subr.mxu0 0.0
        %1110 = vmatpush1.msra.mxu0 0.0
        %1111 = vmatprep.subr.mxu0 0.0
        %1112 = vmatpush1.msra.mxu0 0.0
        %1113 = vmatprep.subr.mxu0 0.0
        %1114 = vmatpush1.msra.mxu0 0.0
        %1115 = vmatprep.subr.mxu0 0.0
        %1116 = vmatpush1.msra.mxu0 0.0
        %1117 = vmatprep.subr.mxu0 0.0
        %1118 = vmatpush1.msra.mxu0 0.0
        %1119 = vmatprep.subr.mxu0 0.0
        %1120 = vmatpush1.msra.mxu0 0.0
        %1121 = vmatprep.subr.mxu0 0.0
        %1122 = vmatpush1.msra.mxu0 0.0
        %1123 = vmatprep.subr.mxu0 0.0
        %1124 = vmatpush1.msra.mxu0 0.0
        %1125 = vmatprep.subr.mxu0 0.0
        %1126 = vmatpush1.msra.mxu0 0.0
        %1127 = vmatprep.subr.mxu0 0.0
        %1128 = vmatpush1.msra.mxu0 0.0
        %1129 = vmatprep.subr.mxu0 0.0
        %1130 = vmatpush1.msra.mxu0 0.0
        %1131 = vmatprep.mubr.f32.mxu0 0.0
        %1132 = vmatmul.mubr.f32.gmra.mrb[0].mxu0 %v1065
        %v1133 = vpop.f32.mrb[0].mxu0
        %v1134 = vadd.f32 %v975, %v1133
        %v1135 = vpop.f32.mrb[0].mxu0
        %1136 = vdwg.mxu0
        %v1137 = vadd.f32 %v984, %v1134
        %v1138 = vsel %vm360, %v1137, 0.0
        %1139 = vadd.xlane.f32.xlu0 %v1138
        %v1140 = vpop.xlane.xlu0 %1139
        %v1141 = vmul.f32 %v1140, %v961
        %v1142 = vsub.f32 %v1137, %v1141
        %v1143 = vmul.f32 %v1142, %v1142
        %v1144 = vsel %vm360, %v1143, 0.0
        %1145 = vadd.xlane.f32.xlu0 %v1144
        %v1146 = vpop.xlane.xlu0 %1145
        %v1147 = vmul.f32 %v1146, %v961
        %v1148 = vadd.f32 %v1147, 1e-05
        %v1149 = vrsqrt.pop %v1148
        %v1150 = vmul.f32 %v1142, %v1149
        %1151 = vrot.lane.b32.xlu0 %v975, 80
        %v1152 = vpop.permute.xlu0 %1151
        %v1154 = vmul.f32 %v1150, %v1152
        %v1155 = vlaneseq
        %v1156 = vshrl.u32 %v1155, 7
        %v1157 = vsub.s32 3, %v1156
        %v1158 = vrot.slane %v355, %v1157
        %v1159 = vadd.f32 %v1154, %v1158
        %v1160 = vld [vmem:[%s1 + $0x68] sm:$0xff]
        %v1161 = vld [vmem:[%s1 + $0x70] sm:$0xff]
        %v1162 = vld [vmem:[%s1 + $0x78] sm:$0xff]
        %v1163 = vld [vmem:[%s1 + $0x80] sm:$0xff]
        %v1164 = vld [vmem:[%s1 + $0x88] sm:$0xff]
        %v1165 = vld [vmem:[%s1 + $0x90] sm:$0xff]
        %v1166 = vld [vmem:[%s1 + $0x98] sm:$0xff]
        %v1167 = vld [vmem:[%s1 + $0xa0] sm:$0xff]
        %v1168 = vld [vmem:[%s1 + $0xa8] sm:$0xff]
        %v1169 = vld [vmem:[%s1 + $0xb0] sm:$0xff]
        %v1170 = vld [vmem:[%s1 + $0xb8] sm:$0xff]
        %v1171 = vld [vmem:[%s1 + $0xc0] sm:$0xff]
        %v1172 = vld [vmem:[%s2 + $0x10] sm:$0xff]
        %v1173 = vlaneseq
        %v1174 = vshrl.u32 %v1173, 7
        %v1175 = vsub.s32 0, %v1174
        %v1176 = vrot.slane %v1172, %v1175
        %v1178 = vsel %vm360, %v1159, 0
        %1180 = vmatprep.subr.mxu0 0.0
        %1181 = vmatpush1.msra.mxu0 %v1160
        %1182 = vmatprep.subr.mxu0 0.0
        %1183 = vmatpush1.msra.mxu0 %v1161
        %1184 = vmatprep.subr.mxu0 0.0
        %1185 = vmatpush1.msra.mxu0 0.0
        %1186 = vmatprep.subr.mxu0 0.0
        %1187 = vmatpush1.msra.mxu0 0.0
        %1188 = vmatprep.subr.mxu0 0.0
        %1189 = vmatpush1.msra.mxu0 0.0
        %1190 = vmatprep.subr.mxu0 0.0
        %1191 = vmatpush1.msra.mxu0 0.0
        %1192 = vmatprep.subr.mxu0 0.0
        %1193 = vmatpush1.msra.mxu0 0.0
        %1194 = vmatprep.subr.mxu0 0.0
        %1195 = vmatpush1.msra.mxu0 0.0
        %1196 = vmatprep.subr.mxu0 0.0
        %1197 = vmatpush1.msra.mxu0 0.0
        %1198 = vmatprep.subr.mxu0 0.0
        %1199 = vmatpush1.msra.mxu0 0.0
        %1200 = vmatprep.subr.mxu0 0.0
        %1201 = vmatpush1.msra.mxu0 0.0
        %1202 = vmatprep.subr.mxu0 0.0
        %1203 = vmatpush1.msra.mxu0 0.0
        %1204 = vmatprep.subr.mxu0 0.0
        %1205 = vmatpush1.msra.mxu0 0.0
        %1206 = vmatprep.subr.mxu0 0.0
        %1207 = vmatpush1.msra.mxu0 0.0
        %1208 = vmatprep.subr.mxu0 0.0
        %1209 = vmatpush1.msra.mxu0 0.0
        %1210 = vmatprep.subr.mxu0 0.0
        %1211 = vmatpush1.msra.mxu0 0.0
        %1212 = vmatprep.subr.mxu0 0.0
        %1213 = vmatpush1.msra.mxu0 0.0
        %1214 = vmatprep.subr.mxu0 0.0
        %1215 = vmatpush1.msra.mxu0 0.0
        %1216 = vmatprep.subr.mxu0 0.0
        %1217 = vmatpush1.msra.mxu0 0.0
        %1218 = vmatprep.subr.mxu0 0.0
        %1219 = vmatpush1.msra.mxu0 0.0
        %1220 = vmatprep.subr.mxu0 0.0
        %1221 = vmatpush1.msra.mxu0 0.0
        %1222 = vmatprep.subr.mxu0 0.0
        %1223 = vmatpush1.msra.mxu0 0.0
        %1224 = vmatprep.subr.mxu0 0.0
        %1225 = vmatpush1.msra.mxu0 0.0
        %1226 = vmatprep.subr.mxu0 0.0
        %1227 = vmatpush1.msra.mxu0 0.0
        %1228 = vmatprep.subr.mxu0 0.0
        %1229 = vmatpush1.msra.mxu0 0.0
        %1230 = vmatprep.subr.mxu0 0.0
        %1231 = vmatpush1.msra.mxu0 0.0
        %1232 = vmatprep.subr.mxu0 0.0
        %1233 = vmatpush1.msra.mxu0 0.0
        %1234 = vmatprep.subr.mxu0 0.0
        %1235 = vmatpush1.msra.mxu0 0.0
        %1236 = vmatprep.subr.mxu0 0.0
        %1237 = vmatpush1.msra.mxu0 0.0
        %1238 = vmatprep.subr.mxu0 0.0
        %1239 = vmatpush1.msra.mxu0 0.0
        %1240 = vmatprep.subr.mxu0 0.0
        %1241 = vmatpush1.msra.mxu0 0.0
        %1242 = vmatprep.subr.mxu0 0.0
        %1243 = vmatpush1.msra.mxu0 0.0
        %1244 = vmatprep.mubr.f32.mxu0 0.0
        %1245 = vmatmul.mubr.f32.gmra.mrb[0].mxu0 %v1178
        %v1246 = vpop.f32.mrb[0].mxu0
        %v1247 = vadd.f32 %v1176, %v1246
        %v1248 = vpop.f32.mrb[0].mxu0
        %1249 = vdwg.mxu0
        %1251 = vrot.lane.b32.xlu0 %v1247, 112
        %v1252 = vpop.permute.xlu0 %1251
        %1254 = vmatprep.subr.mxu0 0.0
        %1255 = vmatpush1.msra.mxu0 %v1252
        %1256 = vmatprep.subr.mxu0 0.0
        %1257 = vmatpush1.msra.mxu0 0.0
        %1258 = vmatprep.subr.mxu0 0.0
        %1259 = vmatpush1.msra.mxu0 0.0
        %1260 = vmatprep.subr.mxu0 0.0
        %1261 = vmatpush1.msra.mxu0 0.0
        %1262 = vmatprep.subr.mxu0 0.0
        %1263 = vmatpush1.msra.mxu0 0.0
        %1264 = vmatprep.subr.mxu0 0.0
        %1265 = vmatpush1.msra.mxu0 0.0
        %1266 = vmatprep.subr.mxu0 0.0
        %1267 = vmatpush1.msra.mxu0 0.0
        %1268 = vmatprep.subr.mxu0 0.0
        %1269 = vmatpush1.msra.mxu0 0.0
        %1270 = vmatprep.subr.mxu0 0.0
        %1271 = vmatpush1.msra.mxu0 0.0
        %1272 = vmatprep.subr.mxu0 0.0
        %1273 = vmatpush1.msra.mxu0 0.0
        %1274 = vmatprep.subr.mxu0 0.0
        %1275 = vmatpush1.msra.mxu0 0.0
        %1276 = vmatprep.subr.mxu0 0.0
        %1277 = vmatpush1.msra.mxu0 0.0
        %1278 = vmatprep.subr.mxu0 0.0
        %1279 = vmatpush1.msra.mxu0 0.0
        %1280 = vmatprep.subr.mxu0 0.0
        %1281 = vmatpush1.msra.mxu0 0.0
        %1282 = vmatprep.subr.mxu0 0.0
        %1283 = vmatpush1.msra.mxu0 0.0
        %1284 = vmatprep.subr.mxu0 0.0
        %1285 = vmatpush1.msra.mxu0 0.0
        %1286 = vmatprep.subr.mxu0 0.0
        %1287 = vmatpush1.msra.mxu0 0.0
        %1288 = vmatprep.subr.mxu0 0.0
        %1289 = vmatpush1.msra.mxu0 0.0
        %1290 = vmatprep.subr.mxu0 0.0
        %1291 = vmatpush1.msra.mxu0 0.0
        %1292 = vmatprep.subr.mxu0 0.0
        %1293 = vmatpush1.msra.mxu0 0.0
        %1294 = vmatprep.subr.mxu0 0.0
        %1295 = vmatpush1.msra.mxu0 0.0
        %1296 = vmatprep.subr.mxu0 0.0
        %1297 = vmatpush1.msra.mxu0 0.0
        %1298 = vmatprep.subr.mxu0 0.0
        %1299 = vmatpush1.msra.mxu0 0.0
        %1300 = vmatprep.subr.mxu0 0.0
        %1301 = vmatpush1.msra.mxu0 0.0
        %1302 = vmatprep.subr.mxu0 0.0
        %1303 = vmatpush1.msra.mxu0 0.0
        %1304 = vmatprep.subr.mxu0 0.0
        %1305 = vmatpush1.msra.mxu0 0.0
        %1306 = vmatprep.subr.mxu0 0.0
        %1307 = vmatpush1.msra.mxu0 0.0
        %1308 = vmatprep.subr.mxu0 0.0
        %1309 = vmatpush1.msra.mxu0 0.0
        %1310 = vmatprep.subr.mxu0 0.0
        %1311 = vmatpush1.msra.mxu0 0.0
        %1312 = vmatprep.subr.mxu0 0.0
        %1313 = vmatpush1.msra.mxu0 0.0
        %1314 = vmatprep.subr.mxu0 0.0
        %1315 = vmatpush1.msra.mxu0 0.0
        %1316 = vmatprep.subr.mxu0 0.0
        %1317 = vmatpush1.msra.mxu0 0.0
        %1318 = vmatprep.mubr.f32.mxu0 0.0
        %1319 = vmatmul.mubr.f32.gmra.mrb[0].mxu0 %v440
        %v1320 = vpop.f32.mrb[0].mxu0
        %v1321 = vadd.f32 0.0, %v1320
        %v1322 = vpop.f32.mrb[0].mxu0
        %1323 = vmatprep.mubr.f32.mxu0 0.0
        %1324 = vmatmul.mubr.f32.gmra.mrb[0].mxu0 %v443
        %v1325 = vpop.f32.mrb[0].mxu0
        %v1326 = vadd.f32 0.0, %v1325
        %v1327 = vpop.f32.mrb[0].mxu0
        %1328 = vmatprep.mubr.f32.mxu0 0.0
        %1329 = vmatmul.mubr.f32.gmra.mrb[0].mxu0 %v446
        %v1330 = vpop.f32.mrb[0].mxu0
        %v1331 = vadd.f32 0.0, %v1330
        %v1332 = vpop.f32.mrb[0].mxu0
        %1333 = vmatprep.mubr.f32.mxu0 0.0
        %1334 = vmatmul.mubr.f32.gmra.mrb[0].mxu0 %v449
        %v1335 = vpop.f32.mrb[0].mxu0
        %v1336 = vadd.f32 0.0, %v1335
        %v1337 = vpop.f32.mrb[0].mxu0
        %1338 = vdwg.mxu0
        %v1339 = vmul.f32 %v1321, %v250
        %v1340 = vmul.f32 %v1326, %v251
        %v1341 = vmul.f32 %v1331, %v252
        %v1342 = vmul.f32 %v1336, %v253
        %1343 = vrot.lane.b32.xlu0 %v1247, 96
        %v1344 = vpop.permute.xlu0 %1343
        %1346 = vmatprep.subr.mxu0 0.0
        %1347 = vmatpush1.msra.mxu0 %v1344
        %1348 = vmatprep.subr.mxu0 0.0
        %1349 = vmatpush1.msra.mxu0 0.0
        %1350 = vmatprep.subr.mxu0 0.0
        %1351 = vmatpush1.msra.mxu0 0.0
        %1352 = vmatprep.subr.mxu0 0.0
        %1353 = vmatpush1.msra.mxu0 0.0
        %1354 = vmatprep.subr.mxu0 0.0
        %1355 = vmatpush1.msra.mxu0 0.0
        %1356 = vmatprep.subr.mxu0 0.0
        %1357 = vmatpush1.msra.mxu0 0.0
        %1358 = vmatprep.subr.mxu0 0.0
        %1359 = vmatpush1.msra.mxu0 0.0
        %1360 = vmatprep.subr.mxu0 0.0
        %1361 = vmatpush1.msra.mxu0 0.0
        %1362 = vmatprep.subr.mxu0 0.0
        %1363 = vmatpush1.msra.mxu0 0.0
        %1364 = vmatprep.subr.mxu0 0.0
        %1365 = vmatpush1.msra.mxu0 0.0
        %1366 = vmatprep.subr.mxu0 0.0
        %1367 = vmatpush1.msra.mxu0 0.0
        %1368 = vmatprep.subr.mxu0 0.0
        %1369 = vmatpush1.msra.mxu0 0.0
        %1370 = vmatprep.subr.mxu0 0.0
        %1371 = vmatpush1.msra.mxu0 0.0
        %1372 = vmatprep.subr.mxu0 0.0
        %1373 = vmatpush1.msra.mxu0 0.0
        %1374 = vmatprep.subr.mxu0 0.0
        %1375 = vmatpush1.msra.mxu0 0.0
        %1376 = vmatprep.subr.mxu0 0.0
        %1377 = vmatpush1.msra.mxu0 0.0
        %1378 = vmatprep.subr.mxu0 0.0
        %1379 = vmatpush1.msra.mxu0 0.0
        %1380 = vmatprep.subr.mxu0 0.0
        %1381 = vmatpush1.msra.mxu0 0.0
        %1382 = vmatprep.subr.mxu0 0.0
        %1383 = vmatpush1.msra.mxu0 0.0
        %1384 = vmatprep.subr.mxu0 0.0
        %1385 = vmatpush1.msra.mxu0 0.0
        %1386 = vmatprep.subr.mxu0 0.0
        %1387 = vmatpush1.msra.mxu0 0.0
        %1388 = vmatprep.subr.mxu0 0.0
        %1389 = vmatpush1.msra.mxu0 0.0
        %1390 = vmatprep.subr.mxu0 0.0
        %1391 = vmatpush1.msra.mxu0 0.0
        %1392 = vmatprep.subr.mxu0 0.0
        %1393 = vmatpush1.msra.mxu0 0.0
        %1394 = vmatprep.subr.mxu0 0.0
        %1395 = vmatpush1.msra.mxu0 0.0
        %1396 = vmatprep.subr.mxu0 0.0
        %1397 = vmatpush1.msra.mxu0 0.0
        %1398 = vmatprep.subr.mxu0 0.0
        %1399 = vmatpush1.msra.mxu0 0.0
        %1400 = vmatprep.subr.mxu0 0.0
        %1401 = vmatpush1.msra.mxu0 0.0
        %1402 = vmatprep.subr.mxu0 0.0
        %1403 = vmatpush1.msra.mxu0 0.0
        %1404 = vmatprep.subr.mxu0 0.0
        %1405 = vmatpush1.msra.mxu0 0.0
        %1406 = vmatprep.subr.mxu0 0.0
        %1407 = vmatpush1.msra.mxu0 0.0
        %1408 = vmatprep.subr.mxu0 0.0
        %1409 = vmatpush1.msra.mxu0 0.0
        %1410 = vmatprep.mubr.f32.mxu0 0.0
        %1411 = vmatmul.mubr.f32.gmra.mrb[0].mxu0 %v440
        %v1412 = vpop.f32.mrb[0].mxu0
        %v1413 = vadd.f32 0.0, %v1412
        %v1414 = vpop.f32.mrb[0].mxu0
        %1415 = vmatprep.mubr.f32.mxu0 0.0
        %1416 = vmatmul.mubr.f32.gmra.mrb[0].mxu0 %v443
        %v1417 = vpop.f32.mrb[0].mxu0
        %v1418 = vadd.f32 0.0, %v1417
        %v1419 = vpop.f32.mrb[0].mxu0
        %1420 = vmatprep.mubr.f32.mxu0 0.0
        %1421 = vmatmul.mubr.f32.gmra.mrb[0].mxu0 %v446
        %v1422 = vpop.f32.mrb[0].mxu0
        %v1423 = vadd.f32 0.0, %v1422
        %v1424 = vpop.f32.mrb[0].mxu0
        %1425 = vmatprep.mubr.f32.mxu0 0.0
        %1426 = vmatmul.mubr.f32.gmra.mrb[0].mxu0 %v449
        %v1427 = vpop.f32.mrb[0].mxu0
        %v1428 = vadd.f32 0.0, %v1427
        %v1429 = vpop.f32.mrb[0].mxu0
        %1430 = vdwg.mxu0
        %v1431 = vmul.f32 %v1413, %v250
        %v1432 = vmul.f32 %v1418, %v251
        %v1433 = vmul.f32 %v1423, %v252
        %v1434 = vmul.f32 %v1428, %v253
        %v1435 = vsel %vm360, %v1247, 0
        %v1438 = vsel %vm360, %v1339, 0
        %v1441 = vsel %vm360, %v1340, 0
        %v1444 = vsel %vm360, %v1341, 0
        %v1447 = vsel %vm360, %v1342, 0
        %1449 = vmatprep.subr.mxu0 0.0
        %1450 = vmatpush1.xpose.msra.mxu0 %v1438
        %1451 = vmatprep.subr.mxu0 0.0
        %1452 = vmatpush1.xpose.msra.mxu0 %v1441
        %1453 = vmatprep.subr.mxu0 0.0
        %1454 = vmatpush1.xpose.msra.mxu0 %v1444
        %1455 = vmatprep.subr.mxu0 0.0
        %1456 = vmatpush1.xpose.msra.mxu0 %v1447
        %1457 = vmatprep.subr.mxu0 0.0
        %1458 = vmatpush1.xpose.msra.mxu0 0.0
        %1459 = vmatprep.subr.mxu0 0.0
        %1460 = vmatpush1.xpose.msra.mxu0 0.0
        %1461 = vmatprep.subr.mxu0 0.0
        %1462 = vmatpush1.xpose.msra.mxu0 0.0
        %1463 = vmatprep.subr.mxu0 0.0
        %1464 = vmatpush1.xpose.msra.mxu0 0.0
        %1465 = vmatprep.subr.mxu0 0.0
        %1466 = vmatpush1.xpose.msra.mxu0 0.0
        %1467 = vmatprep.subr.mxu0 0.0
        %1468 = vmatpush1.xpose.msra.mxu0 0.0
        %1469 = vmatprep.subr.mxu0 0.0
        %1470 = vmatpush1.xpose.msra.mxu0 0.0
        %1471 = vmatprep.subr.mxu0 0.0
        %1472 = vmatpush1.xpose.msra.mxu0 0.0
        %1473 = vmatprep.subr.mxu0 0.0
        %1474 = vmatpush1.xpose.msra.mxu0 0.0
        %1475 = vmatprep.subr.mxu0 0.0
        %1476 = vmatpush1.xpose.msra.mxu0 0.0
        %1477 = vmatprep.subr.mxu0 0.0
        %1478 = vmatpush1.xpose.msra.mxu0 0.0
        %1479 = vmatprep.subr.mxu0 0.0
        %1480 = vmatpush1.xpose.msra.mxu0 0.0
        %1481 = vmatprep.subr.mxu0 0.0
        %1482 = vmatpush1.xpose.msra.mxu0 0.0
        %1483 = vmatprep.subr.mxu0 0.0
        %1484 = vmatpush1.xpose.msra.mxu0 0.0
        %1485 = vmatprep.subr.mxu0 0.0
        %1486 = vmatpush1.xpose.msra.mxu0 0.0
        %1487 = vmatprep.subr.mxu0 0.0
        %1488 = vmatpush1.xpose.msra.mxu0 0.0
        %1489 = vmatprep.subr.mxu0 0.0
        %1490 = vmatpush1.xpose.msra.mxu0 0.0
        %1491 = vmatprep.subr.mxu0 0.0
        %1492 = vmatpush1.xpose.msra.mxu0 0.0
        %1493 = vmatprep.subr.mxu0 0.0
        %1494 = vmatpush1.xpose.msra.mxu0 0.0
        %1495 = vmatprep.subr.mxu0 0.0
        %1496 = vmatpush1.xpose.msra.mxu0 0.0
        %1497 = vmatprep.subr.mxu0 0.0
        %1498 = vmatpush1.xpose.msra.mxu0 0.0
        %1499 = vmatprep.subr.mxu0 0.0
        %1500 = vmatpush1.xpose.msra.mxu0 0.0
        %1501 = vmatprep.subr.mxu0 0.0
        %1502 = vmatpush1.xpose.msra.mxu0 0.0
        %1503 = vmatprep.subr.mxu0 0.0
        %1504 = vmatpush1.xpose.msra.mxu0 0.0
        %1505 = vmatprep.subr.mxu0 0.0
        %1506 = vmatpush1.xpose.msra.mxu0 0.0
        %1507 = vmatprep.subr.mxu0 0.0
        %1508 = vmatpush1.xpose.msra.mxu0 0.0
        %1509 = vmatprep.subr.mxu0 0.0
        %1510 = vmatpush1.xpose.msra.mxu0 0.0
        %1511 = vmatprep.subr.mxu0 0.0
        %1512 = vmatpush1.xpose.msra.mxu0 0.0
        %1513 = vmatprep.mubr.f32.mxu0 0.0
        %1514 = vmatmul.mubr.f32.gmra.mrb[0].mxu0 %v1435
        %v1515 = vpop.f32.mrb[0].mxu0
        %v1516 = vadd.f32 0.0, %v1515
        %v1517 = vpop.f32.mrb[0].mxu0
        %1518 = vdwg.mxu0
        %v1519 = vmul.f32 %v1516, 0.5
        %v1520 = vsel %vm717, %v1519, -inf
        %1521 = vmax.xlane.f32.xlu0 %v1520
        %v1522 = vpop.xlane.xlu0 %1521
        %v1523 = vsub.f32 %v1519, %v1522
        %v1524 = vmul.f32 %v1523, 1.442695
        %v1525 = vpow.pop %v1524
        %v1527 = vsel %vm717, %v1525, 0
        %1529 = vmatprep.subr.mxu0 0.0
        %1530 = vmatpush1.msra.mxu0 %v254
        %1531 = vmatprep.subr.mxu0 0.0
        %1532 = vmatpush1.msra.mxu0 %v255
        %1533 = vmatprep.subr.mxu0 0.0
        %1534 = vmatpush1.msra.mxu0 %v256
        %1535 = vmatprep.subr.mxu0 0.0
        %1536 = vmatpush1.msra.mxu0 %v257
        %1537 = vmatprep.subr.mxu0 0.0
        %1538 = vmatpush1.msra.mxu0 0.0
        %1539 = vmatprep.subr.mxu0 0.0
        %1540 = vmatpush1.msra.mxu0 0.0
        %1541 = vmatprep.subr.mxu0 0.0
        %1542 = vmatpush1.msra.mxu0 0.0
        %1543 = vmatprep.subr.mxu0 0.0
        %1544 = vmatpush1.msra.mxu0 0.0
        %1545 = vmatprep.subr.mxu0 0.0
        %1546 = vmatpush1.msra.mxu0 0.0
        %1547 = vmatprep.subr.mxu0 0.0
        %1548 = vmatpush1.msra.mxu0 0.0
        %1549 = vmatprep.subr.mxu0 0.0
        %1550 = vmatpush1.msra.mxu0 0.0
        %1551 = vmatprep.subr.mxu0 0.0
        %1552 = vmatpush1.msra.mxu0 0.0
        %1553 = vmatprep.subr.mxu0 0.0
        %1554 = vmatpush1.msra.mxu0 0.0
        %1555 = vmatprep.subr.mxu0 0.0
        %1556 = vmatpush1.msra.mxu0 0.0
        %1557 = vmatprep.subr.mxu0 0.0
        %1558 = vmatpush1.msra.mxu0 0.0
        %1559 = vmatprep.subr.mxu0 0.0
        %1560 = vmatpush1.msra.mxu0 0.0
        %1561 = vmatprep.subr.mxu0 0.0
        %1562 = vmatpush1.msra.mxu0 0.0
        %1563 = vmatprep.subr.mxu0 0.0
        %1564 = vmatpush1.msra.mxu0 0.0
        %1565 = vmatprep.subr.mxu0 0.0
        %1566 = vmatpush1.msra.mxu0 0.0
        %1567 = vmatprep.subr.mxu0 0.0
        %1568 = vmatpush1.msra.mxu0 0.0
        %1569 = vmatprep.subr.mxu0 0.0
        %1570 = vmatpush1.msra.mxu0 0.0
        %1571 = vmatprep.subr.mxu0 0.0
        %1572 = vmatpush1.msra.mxu0 0.0
        %1573 = vmatprep.subr.mxu0 0.0
        %1574 = vmatpush1.msra.mxu0 0.0
        %1575 = vmatprep.subr.mxu0 0.0
        %1576 = vmatpush1.msra.mxu0 0.0
        %1577 = vmatprep.subr.mxu0 0.0
        %1578 = vmatpush1.msra.mxu0 0.0
        %1579 = vmatprep.subr.mxu0 0.0
        %1580 = vmatpush1.msra.mxu0 0.0
        %1581 = vmatprep.subr.mxu0 0.0
        %1582 = vmatpush1.msra.mxu0 0.0
        %1583 = vmatprep.subr.mxu0 0.0
        %1584 = vmatpush1.msra.mxu0 0.0
        %1585 = vmatprep.subr.mxu0 0.0
        %1586 = vmatpush1.msra.mxu0 0.0
        %1587 = vmatprep.subr.mxu0 0.0
        %1588 = vmatpush1.msra.mxu0 0.0
        %1589 = vmatprep.subr.mxu0 0.0
        %1590 = vmatpush1.msra.mxu0 0.0
        %1591 = vmatprep.subr.mxu0 0.0
        %1592 = vmatpush1.msra.mxu0 0.0
        %1593 = vmatprep.mubr.f32.mxu0 0.0
        %1594 = vmatmul.mubr.f32.gmra.mrb[0].mxu0 %v1527
        %v1595 = vpop.f32.mrb[0].mxu0
        %v1596 = vadd.f32 0.0, %v1595
        %v1597 = vpop.f32.mrb[0].mxu0
        %1598 = vdwg.mxu0
        %v1599 = vrcp.pop %v1596
        %v1600 = vmul.f32 %v1525, %v1599
        %v1602 = vsel %vm717, %v1600, 0
        %1604 = vmatprep.subr.mxu0 0.0
        %1605 = vmatpush1.msra.mxu0 %v1431
        %1606 = vmatprep.subr.mxu0 0.0
        %1607 = vmatpush1.msra.mxu0 %v1432
        %1608 = vmatprep.subr.mxu0 0.0
        %1609 = vmatpush1.msra.mxu0 %v1433
        %1610 = vmatprep.subr.mxu0 0.0
        %1611 = vmatpush1.msra.mxu0 %v1434
        %1612 = vmatprep.subr.mxu0 0.0
        %1613 = vmatpush1.msra.mxu0 0.0
        %1614 = vmatprep.subr.mxu0 0.0
        %1615 = vmatpush1.msra.mxu0 0.0
        %1616 = vmatprep.subr.mxu0 0.0
        %1617 = vmatpush1.msra.mxu0 0.0
        %1618 = vmatprep.subr.mxu0 0.0
        %1619 = vmatpush1.msra.mxu0 0.0
        %1620 = vmatprep.subr.mxu0 0.0
        %1621 = vmatpush1.msra.mxu0 0.0
        %1622 = vmatprep.subr.mxu0 0.0
        %1623 = vmatpush1.msra.mxu0 0.0
        %1624 = vmatprep.subr.mxu0 0.0
        %1625 = vmatpush1.msra.mxu0 0.0
        %1626 = vmatprep.subr.mxu0 0.0
        %1627 = vmatpush1.msra.mxu0 0.0
        %1628 = vmatprep.subr.mxu0 0.0
        %1629 = vmatpush1.msra.mxu0 0.0
        %1630 = vmatprep.subr.mxu0 0.0
        %1631 = vmatpush1.msra.mxu0 0.0
        %1632 = vmatprep.subr.mxu0 0.0
        %1633 = vmatpush1.msra.mxu0 0.0
        %1634 = vmatprep.subr.mxu0 0.0
        %1635 = vmatpush1.msra.mxu0 0.0
        %1636 = vmatprep.subr.mxu0 0.0
        %1637 = vmatpush1.msra.mxu0 0.0
        %1638 = vmatprep.subr.mxu0 0.0
        %1639 = vmatpush1.msra.mxu0 0.0
        %1640 = vmatprep.subr.mxu0 0.0
        %1641 = vmatpush1.msra.mxu0 0.0
        %1642 = vmatprep.subr.mxu0 0.0
        %1643 = vmatpush1.msra.mxu0 0.0
        %1644 = vmatprep.subr.mxu0 0.0
        %1645 = vmatpush1.msra.mxu0 0.0
        %1646 = vmatprep.subr.mxu0 0.0
        %1647 = vmatpush1.msra.mxu0 0.0
        %1648 = vmatprep.subr.mxu0 0.0
        %1649 = vmatpush1.msra.mxu0 0.0
        %1650 = vmatprep.subr.mxu0 0.0
        %1651 = vmatpush1.msra.mxu0 0.0
        %1652 = vmatprep.subr.mxu0 0.0
        %1653 = vmatpush1.msra.mxu0 0.0
        %1654 = vmatprep.subr.mxu0 0.0
        %1655 = vmatpush1.msra.mxu0 0.0
        %1656 = vmatprep.subr.mxu0 0.0
        %1657 = vmatpush1.msra.mxu0 0.0
        %1658 = vmatprep.subr.mxu0 0.0
        %1659 = vmatpush1.msra.mxu0 0.0
        %1660 = vmatprep.subr.mxu0 0.0
        %1661 = vmatpush1.msra.mxu0 0.0
        %1662 = vmatprep.subr.mxu0 0.0
        %1663 = vmatpush1.msra.mxu0 0.0
        %1664 = vmatprep.subr.mxu0 0.0
        %1665 = vmatpush1.msra.mxu0 0.0
        %1666 = vmatprep.subr.mxu0 0.0
        %1667 = vmatpush1.msra.mxu0 0.0
        %1668 = vmatprep.mubr.f32.mxu0 0.0
        %1669 = vmatmul.mubr.f32.gmra.mrb[0].mxu0 %v1602
        %v1670 = vpop.f32.mrb[0].mxu0
        %v1671 = vadd.f32 0.0, %v1670
        %v1672 = vpop.f32.mrb[0].mxu0
        %1673 = vdwg.mxu0
        %1676 = vrot.lane.b32.xlu0 %v1160, 80
        %v1677 = vpop.permute.xlu0 %1676
        %1678 = vrot.lane.b32.xlu0 %v1161, 80
        %v1679 = vpop.permute.xlu0 %1678
        %1683 = vrot.lane.b32.xlu0 %v1176, 80
        %v1684 = vpop.permute.xlu0 %1683
        %v1687 = vsel %vm360, %v1671, 0
        %1689 = vmatprep.subr.mxu0 0.0
        %1690 = vmatpush1.msra.mxu0 %v1677
        %1691 = vmatprep.subr.mxu0 0.0
        %1692 = vmatpush1.msra.mxu0 %v1679
        %1693 = vmatprep.subr.mxu0 0.0
        %1694 = vmatpush1.msra.mxu0 0.0
        %1695 = vmatprep.subr.mxu0 0.0
        %1696 = vmatpush1.msra.mxu0 0.0
        %1697 = vmatprep.subr.mxu0 0.0
        %1698 = vmatpush1.msra.mxu0 0.0
        %1699 = vmatprep.subr.mxu0 0.0
        %1700 = vmatpush1.msra.mxu0 0.0
        %1701 = vmatprep.subr.mxu0 0.0
        %1702 = vmatpush1.msra.mxu0 0.0
        %1703 = vmatprep.subr.mxu0 0.0
        %1704 = vmatpush1.msra.mxu0 0.0
        %1705 = vmatprep.subr.mxu0 0.0
        %1706 = vmatpush1.msra.mxu0 0.0
        %1707 = vmatprep.subr.mxu0 0.0
        %1708 = vmatpush1.msra.mxu0 0.0
        %1709 = vmatprep.subr.mxu0 0.0
        %1710 = vmatpush1.msra.mxu0 0.0
        %1711 = vmatprep.subr.mxu0 0.0
        %1712 = vmatpush1.msra.mxu0 0.0
        %1713 = vmatprep.subr.mxu0 0.0
        %1714 = vmatpush1.msra.mxu0 0.0
        %1715 = vmatprep.subr.mxu0 0.0
        %1716 = vmatpush1.msra.mxu0 0.0
        %1717 = vmatprep.subr.mxu0 0.0
        %1718 = vmatpush1.msra.mxu0 0.0
        %1719 = vmatprep.subr.mxu0 0.0
        %1720 = vmatpush1.msra.mxu0 0.0
        %1721 = vmatprep.subr.mxu0 0.0
        %1722 = vmatpush1.msra.mxu0 0.0
        %1723 = vmatprep.subr.mxu0 0.0
        %1724 = vmatpush1.msra.mxu0 0.0
        %1725 = vmatprep.subr.mxu0 0.0
        %1726 = vmatpush1.msra.mxu0 0.0
        %1727 = vmatprep.subr.mxu0 0.0
        %1728 = vmatpush1.msra.mxu0 0.0
        %1729 = vmatprep.subr.mxu0 0.0
        %1730 = vmatpush1.msra.mxu0 0.0
        %1731 = vmatprep.subr.mxu0 0.0
        %1732 = vmatpush1.msra.mxu0 0.0
        %1733 = vmatprep.subr.mxu0 0.0
        %1734 = vmatpush1.msra.mxu0 0.0
        %1735 = vmatprep.subr.mxu0 0.0
        %1736 = vmatpush1.msra.mxu0 0.0
        %1737 = vmatprep.subr.mxu0 0.0
        %1738 = vmatpush1.msra.mxu0 0.0
        %1739 = vmatprep.subr.mxu0 0.0
        %1740 = vmatpush1.msra.mxu0 0.0
        %1741 = vmatprep.subr.mxu0 0.0
        %1742 = vmatpush1.msra.mxu0 0.0
        %1743 = vmatprep.subr.mxu0 0.0
        %1744 = vmatpush1.msra.mxu0 0.0
        %1745 = vmatprep.subr.mxu0 0.0
        %1746 = vmatpush1.msra.mxu0 0.0
        %1747 = vmatprep.subr.mxu0 0.0
        %1748 = vmatpush1.msra.mxu0 0.0
        %1749 = vmatprep.subr.mxu0 0.0
        %1750 = vmatpush1.msra.mxu0 0.0
        %1751 = vmatprep.subr.mxu0 0.0
        %1752 = vmatpush1.msra.mxu0 0.0
        %1753 = vmatprep.mubr.f32.mxu0 0.0
        %1754 = vmatmul.mubr.f32.gmra.mrb[0].mxu0 %v1687
        %v1755 = vpop.f32.mrb[0].mxu0
        %v1756 = vadd.f32 %v1684, %v1755
        %v1757 = vpop.f32.mrb[0].mxu0
        %1758 = vdwg.mxu0
        %v1759 = vadd.f32 %v1159, %v1756
        %v1760 = vsel %vm360, %v1759, 0.0
        %1761 = vadd.xlane.f32.xlu0 %v1760
        %v1762 = vpop.xlane.xlu0 %1761
        %v1763 = vmul.f32 %v1762, %v961
        %v1764 = vsub.f32 %v1759, %v1763
        %v1765 = vmul.f32 %v1764, %v1764
        %v1766 = vsel %vm360, %v1765, 0.0
        %1767 = vadd.xlane.f32.xlu0 %v1766
        %v1768 = vpop.xlane.xlu0 %1767
        %v1769 = vmul.f32 %v1768, %v961
        %v1770 = vadd.f32 %v1769, 1e-05
        %v1771 = vrsqrt.pop %v1770
        %v1772 = vmul.f32 %v1764, %v1771
        %v1773 = vlaneseq
        %v1774 = vshrl.u32 %v1773, 7
        %v1775 = vsub.s32 2, %v1774
        %v1776 = vrot.slane %v1172, %v1775
        %1778 = vrot.lane.b32.xlu0 %v1776, 112
        %v1779 = vpop.permute.xlu0 %1778
        %v1781 = vmul.f32 %v1772, %v1779
        %1782 = vrot.lane.b32.xlu0 %v1776, 96
        %v1783 = vpop.permute.xlu0 %1782
        %v1785 = vadd.f32 %v1781, %v1783
        %v1786 = vlaneseq
        %v1787 = vshrl.u32 %v1786, 7
        %v1788 = vsub.s32 1, %v1787
        %v1789 = vrot.slane %v1172, %v1788
        %v1791 = vsel %vm360, %v1785, 0
        %1793 = vmatprep.subr.mxu0 0.0
        %1794 = vmatpush1.msra.mxu0 %v1162
        %1795 = vmatprep.subr.mxu0 0.0
        %1796 = vmatpush1.msra.mxu0 %v1163
        %1797 = vmatprep.subr.mxu0 0.0
        %1798 = vmatpush1.msra.mxu0 0.0
        %1799 = vmatprep.subr.mxu0 0.0
        %1800 = vmatpush1.msra.mxu0 0.0
        %1801 = vmatprep.subr.mxu0 0.0
        %1802 = vmatpush1.msra.mxu0 0.0
        %1803 = vmatprep.subr.mxu0 0.0
        %1804 = vmatpush1.msra.mxu0 0.0
        %1805 = vmatprep.subr.mxu0 0.0
        %1806 = vmatpush1.msra.mxu0 0.0
        %1807 = vmatprep.subr.mxu0 0.0
        %1808 = vmatpush1.msra.mxu0 0.0
        %1809 = vmatprep.subr.mxu0 0.0
        %1810 = vmatpush1.msra.mxu0 0.0
        %1811 = vmatprep.subr.mxu0 0.0
        %1812 = vmatpush1.msra.mxu0 0.0
        %1813 = vmatprep.subr.mxu0 0.0
        %1814 = vmatpush1.msra.mxu0 0.0
        %1815 = vmatprep.subr.mxu0 0.0
        %1816 = vmatpush1.msra.mxu0 0.0
        %1817 = vmatprep.subr.mxu0 0.0
        %1818 = vmatpush1.msra.mxu0 0.0
        %1819 = vmatprep.subr.mxu0 0.0
        %1820 = vmatpush1.msra.mxu0 0.0
        %1821 = vmatprep.subr.mxu0 0.0
        %1822 = vmatpush1.msra.mxu0 0.0
        %1823 = vmatprep.subr.mxu0 0.0
        %1824 = vmatpush1.msra.mxu0 0.0
        %1825 = vmatprep.subr.mxu0 0.0
        %1826 = vmatpush1.msra.mxu0 0.0
        %1827 = vmatprep.subr.mxu0 0.0
        %1828 = vmatpush1.msra.mxu0 0.0
        %1829 = vmatprep.subr.mxu0 0.0
        %1830 = vmatpush1.msra.mxu0 0.0
        %1831 = vmatprep.subr.mxu0 0.0
        %1832 = vmatpush1.msra.mxu0 0.0
        %1833 = vmatprep.subr.mxu0 0.0
        %1834 = vmatpush1.msra.mxu0 0.0
        %1835 = vmatprep.subr.mxu0 0.0
        %1836 = vmatpush1.msra.mxu0 0.0
        %1837 = vmatprep.subr.mxu0 0.0
        %1838 = vmatpush1.msra.mxu0 0.0
        %1839 = vmatprep.subr.mxu0 0.0
        %1840 = vmatpush1.msra.mxu0 0.0
        %1841 = vmatprep.subr.mxu0 0.0
        %1842 = vmatpush1.msra.mxu0 0.0
        %1843 = vmatprep.subr.mxu0 0.0
        %1844 = vmatpush1.msra.mxu0 0.0
        %1845 = vmatprep.subr.mxu0 0.0
        %1846 = vmatpush1.msra.mxu0 0.0
        %1847 = vmatprep.subr.mxu0 0.0
        %1848 = vmatpush1.msra.mxu0 0.0
        %1849 = vmatprep.subr.mxu0 0.0
        %1850 = vmatpush1.msra.mxu0 0.0
        %1851 = vmatprep.subr.mxu0 0.0
        %1852 = vmatpush1.msra.mxu0 0.0
        %1853 = vmatprep.subr.mxu0 0.0
        %1854 = vmatpush1.msra.mxu0 0.0
        %1855 = vmatprep.subr.mxu0 0.0
        %1856 = vmatpush1.msra.mxu0 0.0
        %1857 = vmatprep.mubr.f32.mxu0 0.0
        %1858 = vmatmul.mubr.f32.gmra.mrb[0].mxu0 %v1791
        %v1859 = vpop.f32.mrb[0].mxu0
        %v1860 = vadd.f32 %v1789, %v1859
        %v1861 = vpop.f32.mrb[0].mxu0
        %1862 = vdwg.mxu0
        %v1863 = vmax.f32 %v1860, 0.0
        %v1865 = vsel %vm1063, %v1863, 0
        %1867 = vmatprep.subr.mxu0 0.0
        %1868 = vmatpush1.msra.mxu0 %v1164
        %1869 = vmatprep.subr.mxu0 0.0
        %1870 = vmatpush1.msra.mxu0 %v1165
        %1871 = vmatprep.subr.mxu0 0.0
        %1872 = vmatpush1.msra.mxu0 %v1166
        %1873 = vmatprep.subr.mxu0 0.0
        %1874 = vmatpush1.msra.mxu0 %v1167
        %1875 = vmatprep.subr.mxu0 0.0
        %1876 = vmatpush1.msra.mxu0 %v1168
        %1877 = vmatprep.subr.mxu0 0.0
        %1878 = vmatpush1.msra.mxu0 %v1169
        %1879 = vmatprep.subr.mxu0 0.0
        %1880 = vmatpush1.msra.mxu0 %v1170
        %1881 = vmatprep.subr.mxu0 0.0
        %1882 = vmatpush1.msra.mxu0 %v1171
        %1883 = vmatprep.subr.mxu0 0.0
        %1884 = vmatpush1.msra.mxu0 0.0
        %1885 = vmatprep.subr.mxu0 0.0
        %1886 = vmatpush1.msra.mxu0 0.0
        %1887 = vmatprep.subr.mxu0 0.0
        %1888 = vmatpush1.msra.mxu0 0.0
        %1889 = vmatprep.subr.mxu0 0.0
        %1890 = vmatpush1.msra.mxu0 0.0
        %1891 = vmatprep.subr.mxu0 0.0
        %1892 = vmatpush1.msra.mxu0 0.0
        %1893 = vmatprep.subr.mxu0 0.0
        %1894 = vmatpush1.msra.mxu0 0.0
        %1895 = vmatprep.subr.mxu0 0.0
        %1896 = vmatpush1.msra.mxu0 0.0
        %1897 = vmatprep.subr.mxu0 0.0
        %1898 = vmatpush1.msra.mxu0 0.0
        %1899 = vmatprep.subr.mxu0 0.0
        %1900 = vmatpush1.msra.mxu0 0.0
        %1901 = vmatprep.subr.mxu0 0.0
        %1902 = vmatpush1.msra.mxu0 0.0
        %1903 = vmatprep.subr.mxu0 0.0
        %1904 = vmatpush1.msra.mxu0 0.0
        %1905 = vmatprep.subr.mxu0 0.0
        %1906 = vmatpush1.msra.mxu0 0.0
        %1907 = vmatprep.subr.mxu0 0.0
        %1908 = vmatpush1.msra.mxu0 0.0
        %1909 = vmatprep.subr.mxu0 0.0
        %1910 = vmatpush1.msra.mxu0 0.0
        %1911 = vmatprep.subr.mxu0 0.0
        %1912 = vmatpush1.msra.mxu0 0.0
        %1913 = vmatprep.subr.mxu0 0.0
        %1914 = vmatpush1.msra.mxu0 0.0
        %1915 = vmatprep.subr.mxu0 0.0
        %1916 = vmatpush1.msra.mxu0 0.0
        %1917 = vmatprep.subr.mxu0 0.0
        %1918 = vmatpush1.msra.mxu0 0.0
        %1919 = vmatprep.subr.mxu0 0.0
        %1920 = vmatpush1.msra.mxu0 0.0
        %1921 = vmatprep.subr.mxu0 0.0
        %1922 = vmatpush1.msra.mxu0 0.0
        %1923 = vmatprep.subr.mxu0 0.0
        %1924 = vmatpush1.msra.mxu0 0.0
        %1925 = vmatprep.subr.mxu0 0.0
        %1926 = vmatpush1.msra.mxu0 0.0
        %1927 = vmatprep.subr.mxu0 0.0
        %1928 = vmatpush1.msra.mxu0 0.0
        %1929 = vmatprep.subr.mxu0 0.0
        %1930 = vmatpush1.msra.mxu0 0.0
        %1931 = vmatprep.mubr.f32.mxu0 0.0
        %1932 = vmatmul.mubr.f32.gmra.mrb[0].mxu0 %v1865
        %v1933 = vpop.f32.mrb[0].mxu0
        %v1934 = vadd.f32 %v1776, %v1933
        %v1935 = vpop.f32.mrb[0].mxu0
        %1936 = vdwg.mxu0
        %v1937 = vadd.f32 %v1785, %v1934
        %v1938 = vsel %vm360, %v1937, 0.0
        %1939 = vadd.xlane.f32.xlu0 %v1938
        %v1940 = vpop.xlane.xlu0 %1939
        %v1941 = vmul.f32 %v1940, %v961
        %v1942 = vsub.f32 %v1937, %v1941
        %v1943 = vmul.f32 %v1942, %v1942
        %v1944 = vsel %vm360, %v1943, 0.0
        %1945 = vadd.xlane.f32.xlu0 %v1944
        %v1946 = vpop.xlane.xlu0 %1945
        %v1947 = vmul.f32 %v1946, %v961
        %v1948 = vadd.f32 %v1947, 1e-05
        %v1949 = vrsqrt.pop %v1948
        %v1950 = vmul.f32 %v1942, %v1949
        %1951 = vrot.lane.b32.xlu0 %v1776, 80
        %v1952 = vpop.permute.xlu0 %1951
        %v1954 = vmul.f32 %v1950, %v1952
        %v1955 = vlaneseq
        %v1956 = vshrl.u32 %v1955, 7
        %v1957 = vsub.s32 3, %v1956
        %v1958 = vrot.slane %v1172, %v1957
        %v1959 = vadd.f32 %v1954, %v1958
        %vm1960 = vcmask 130055
        %1961 = vst.msk [vmem:[%s241 - $0x7] sm:$0x80] %vm1960, %v1959
        %s1962 = sand.u32 %s159, 1
        %s1963 = scalar_lea.sflag [#allocation3], %s1962
        %s1964 = sand.u32 %s159, 1
        %s1965 = scalar_lea.vmem [#allocation2], %s1964
        // Predicated region
        $region45: #{tpu_custom_call.1} parent=43 // pred_check
          %p1966 = pneg %p169
        $region46: #{tpu_custom_call.1} parent=43 // pred_check_branch
          %1968 = sbr.rel (%p1966) target = $region48
        $region47: #{tpu_custom_call.1} parent=43 // pred_region
          %s1970 = ssub.s32 16, 16
          %1971 = vsyncadd %s1963, %s1970
          %s1972 = smul.addr %s20, 16
          %s1973 = scalar_lea.hbm %s6, %s1972
          %s1975 = sshll.u32 %s1965, 4
          %s1976 = int_to_ptr.vmem [resolvable:$true] %s1975
          %1978 = dma.vmem_to_hbm [thread:$0]  %s1976, 16, %s1973, %s1963
        $region48: #{tpu_custom_call.1} parent=43 // pred_fallthru
          _
      $region44: #{tpu_custom_call.1} parent=5 // pred_fallthru
        _
      %p1979 = scmp.le.s32.totalorder 2, %s15
      // Predicated region
      $region49: #{tpu_custom_call.1} parent=5 // pred_check
        %p1980 = pneg %p1979
      $region50: #{tpu_custom_call.1} parent=5 // pred_check_branch
        %1982 = sbr.rel (%p1980) target = $region52
      $region51: #{tpu_custom_call.1} parent=5 // pred_region
        %s1983 = ssub.s32 %s15, 2
        // Predicated region
        $region53: #{tpu_custom_call.1} parent=51 // pred_check
          %p1984 = pneg %p175
        $region54: #{tpu_custom_call.1} parent=51 // pred_check_branch
          %1986 = sbr.rel (%p1984) target = $region56
        $region55: #{tpu_custom_call.1} parent=51 // pred_region
          %s1987 = sand.u32 %s160, 1
          %s1988 = scalar_lea.sflag [#allocation3], %s1987
          %s1989 = sand.u32 %s160, 1
          %s1990 = scalar_lea.vmem [#allocation2], %s1989
          %1991 = dma.done %s1988, 16
        $region56: #{tpu_custom_call.1} parent=51 // pred_fallthru
          _
      $region52: #{tpu_custom_call.1} parent=5 // pred_fallthru
        _
    $region6: #{tpu_custom_call.1} parent=1 // loop_footer
      %s19 = sadd.s32 1, %s15
    $region7: #{tpu_custom_call.1} parent=1 // loop_footer_branch
      %14 = sbr.rel target = $region3
    $region8: #{tpu_custom_call.1} parent=1 // loop_exit
      _
    %1992 = vsyncpa [#allocation3], 1
    %s1993 = scalar_lea.sflag [#allocation3], 1
    %1994 = vsyncpa %s1993, 1

</llo_original>
